<compile_context>
chip_gen: v7x
topology: tpu7x:2x2x1
jax: 0.10.0
libtpu: 0.0.40
codegen_flags: <defaults>
</compile_context>

<pallas_src>
import functools

import jax
import jax.numpy as jnp
from jax.experimental import pallas as pl
from jax.experimental.pallas import tpu as pltpu


def subgoal_kernel(max_subgoals, hidden_dim, input_dim,
                   goal_ref, state_ref, w_ref, v_ref,
                   sg_ref, emb_ref, stop_ref):
    f32 = jnp.float32
    H = hidden_dim
    D = input_dim
    Hh = H // 2

    goal = goal_ref[...].astype(f32)              # [B, D]
    h = state_ref[...].astype(f32)                # [B, H]
    B = h.shape[0]

    # ---- one-time slab loads + static slices (loop-invariant, hoisted) ----
    W = w_ref[...].astype(f32)                    # [max(H,D), 8H + D + H/2]
    wh = W[:H, 0:4 * H]                           # [H,4H] = w_hr|w_hz|w_hn|sd_w1 (one MXU tile)
    wgi = W[:H, 4 * H:7 * H]                      # [H,3H] = ge_w2 @ (w_ir|w_iz|w_in)  (folded)
    ge_w1 = W[:D, 7 * H:8 * H]                    # [D,H]
    sd_w2 = W[:H, 8 * H:8 * H + D]                # [H,D]
    sp_w1 = W[:H, 8 * H + D:8 * H + D + Hh]       # [H,H/2]

    V = v_ref[...].astype(f32)                    # [11, max(4H, D)]
    bh = jnp.broadcast_to(V[0:1, 0:4 * H], (B, 4 * H))       # b_hr|b_hz|b_hn|sd_b1
    b_gi = V[1:2, 0:3 * H]                                    # ge_b2@wi + (b_ir|b_iz|b_in)
    ge_b1 = V[2:3, 0:H]
    ge_g = V[3:4, 0:H]
    ge_beta = V[4:5, 0:H]
    sd_g = jnp.broadcast_to(V[5:6, 0:H], (B, H))
    sd_beta = jnp.broadcast_to(V[6:7, 0:H], (B, H))
    sd_b2 = jnp.broadcast_to(V[7:8, 0:D], (B, D))
    sp_b1 = jnp.broadcast_to(V[8:9, 0:Hh], (B, Hh))
    sp_w2 = jnp.broadcast_to(V[9:10, 0:Hh], (B, Hh))
    sp_b2 = jnp.broadcast_to(V[10:11, 0:1], (B, 1))

    def layernorm(x, g, b, eps=1e-5):
        # single-pass variance: both reductions issue back-to-back on the XLU
        mu = jnp.mean(x, axis=-1, keepdims=True)
        mu2 = jnp.mean(x * x, axis=-1, keepdims=True)
        var = mu2 - mu * mu
        return (x - mu) * jax.lax.rsqrt(var + eps) * g + b

    # ---- goal encoder L1 + LN + ReLU, then folded (encoder-L2 ∘ input-gate) matmul ----
    x1 = jnp.dot(goal, ge_w1, preferred_element_type=f32) + ge_b1
    x1 = jnp.maximum(layernorm(x1, ge_g, ge_beta), 0.0)
    i_all = jnp.dot(x1, wgi, preferred_element_type=f32) + b_gi       # [B,3H] = r|z|n input side
    i_rz = i_all[:, 0:2 * H]
    i_n = i_all[:, 2 * H:3 * H]

    # fused h-consumer matmul for the initial hidden state (decoder slice unused — free)
    hh = jnp.dot(h, wh, preferred_element_type=f32) + bh              # [B, 4H]

    sg_cols, emb_cols, stop_cols = [], [], []
    for _ in range(max_subgoals):
        # ---- GRUCell (PyTorch semantics) using the pre-computed hidden-side gates ----
        rz = jax.nn.sigmoid(i_rz + hh[:, 0:2 * H])
        r = rz[:, 0:H]
        z = rz[:, H:2 * H]
        n = jnp.tanh(i_n + r * hh[:, 2 * H:3 * H])
        h = (1.0 - z) * n + z * h

        # one 128-wide fused matmul on the NEW h: next-step gates + this step's decoder L1
        hh = jnp.dot(h, wh, preferred_element_type=f32) + bh
        d1 = hh[:, 3 * H:4 * H]                                       # h @ sd_w1 + sd_b1

        # ---- stop predictor: small off-critical-path matmul -> ReLU -> lane reduce -> sigmoid ----
        sp1 = jnp.maximum(jnp.dot(h, sp_w1, preferred_element_type=f32) + sp_b1, 0.0)
        stop = jax.nn.sigmoid(jnp.sum(sp1 * sp_w2, axis=-1, keepdims=True) + sp_b2)   # [B,1]
        stop_cols.append(stop)

        # ---- subgoal decoder: (fused L1) -> LayerNorm -> ReLU -> Linear ----
        d = jnp.maximum(layernorm(d1, sd_g, sd_beta), 0.0)
        sg_cols.append(jnp.dot(d, sd_w2, preferred_element_type=f32) + sd_b2)          # [B,D]
        emb_cols.append(h)

    # ---- single lane-dense store per output, already in final (row-major) layout ----
    sg_ref[...] = jnp.concatenate(sg_cols, axis=-1).astype(sg_ref.dtype)     # [B, S*D]
    emb_ref[...] = jnp.concatenate(emb_cols, axis=-1).astype(emb_ref.dtype)  # [B, S*H]
    stop_ref[...] = jnp.concatenate(stop_cols, axis=-1).astype(stop_ref.dtype)  # [B, S]


def pack_params(params):
    """One-time (init-time) packing of the 28 raw parameters into 2 lane-dense slabs."""
    (ge_w1, ge_b1, ge_g, ge_beta, ge_w2, ge_b2,
     w_ir, w_iz, w_in_, b_ir, b_iz, b_in_,
     w_hr, w_hz, w_hn, b_hr, b_hz, b_hn,
     sd_w1, sd_b1, sd_g, sd_beta, sd_w2, sd_b2,
     sp_w1, sp_b1, sp_w2, sp_b2) = params

    D, H = ge_w1.shape
    Hh = H // 2

    # fold goal-encoder second Linear into the input-side GRU gate matmul
    wi = jnp.concatenate([w_ir, w_iz, w_in_], axis=1)                         # [H, 3H]
    bi = jnp.concatenate([b_ir, b_iz, b_in_], axis=1)                         # [1, 3H]
    w_gi = jnp.dot(ge_w2, wi)                                                 # [H, 3H]
    b_gi = jnp.dot(ge_b2, wi) + bi                                            # [1, 3H]

    wh = jnp.concatenate([w_hr, w_hz, w_hn, sd_w1], axis=1)                   # [H, 4H] (=128 cols)
    bh = jnp.concatenate([b_hr, b_hz, b_hn, sd_b1], axis=1)                   # [1, 4H]

    R = max(H, D)

    def padr(w):
        return jnp.pad(w, ((0, R - w.shape[0]), (0, 0)))

    w_slab = jnp.concatenate(
        [padr(wh), padr(w_gi), padr(ge_w1), padr(sd_w2), padr(sp_w1)], axis=1)  # [R, 8H+D+H/2]

    VW = max(4 * H, D)

    def padv(v):
        return jnp.pad(v, ((0, 0), (0, VW - v.shape[1])))

    sp_w2_row = jnp.reshape(sp_w2, (1, Hh))
    v_slab = jnp.concatenate(
        [padv(bh), padv(b_gi), padv(ge_b1), padv(ge_g), padv(ge_beta),
         padv(sd_g), padv(sd_beta), padv(sd_b2), padv(sp_b1),
         padv(sp_w2_row), padv(sp_b2)], axis=0)                               # [11, VW]
    return w_slab, v_slab


@functools.partial(jax.jit, static_argnames=("max_subgoals",))
def subgoal_decomposer(goal, state, w_slab, v_slab, max_subgoals=5):
    """Returns (subgoals [B,S,D], subgoal_embeddings [B,S,H], stop_probs [B,S])."""
    B, D = goal.shape
    H = state.shape[1]
    Hh = H // 2
    S = max_subgoals

    flops = (2 * B * D * H + 2 * B * H * 3 * H
             + S * (2 * B * H * 4 * H + 2 * B * H * Hh + 2 * B * H * D))
    transcendentals = S * B * (3 * H + 2) + 2 * B * H
    bytes_accessed = (goal.size + state.size + w_slab.size + v_slab.size
                      + B * S * (D + H + 1)) * 4

    out_shapes = (
        jax.ShapeDtypeStruct((B, S * D), jnp.float32),   # subgoals, lane-dense
        jax.ShapeDtypeStruct((B, S * H), jnp.float32),   # embeddings, lane-dense
        jax.ShapeDtypeStruct((B, S), jnp.float32),       # stop probs
    )
    vmem = pl.BlockSpec(memory_space=pltpu.MemorySpace.VMEM)
    fn = pl.pallas_call(
        functools.partial(subgoal_kernel, S, H, D),
        out_shape=out_shapes,
        in_specs=[vmem, vmem, vmem, vmem],
        out_specs=(vmem, vmem, vmem),
        compiler_params=pltpu.CompilerParams(vmem_limit_bytes=8 * 1024 * 1024),
        cost_estimate=pl.CostEstimate(flops=flops, transcendentals=transcendentals,
                                      bytes_accessed=bytes_accessed),
    )
    sg_flat, emb_flat, stops = fn(goal, state, w_slab, v_slab)
    # reshape only (row-major contiguous) — no transposes on the latency path
    return sg_flat.reshape(B, S, D), emb_flat.reshape(B, S, H), stops


def init_params(key, input_dim, hidden_dim):
    """Deterministic (seeded) parameter init mimicking PyTorch uniform init."""
    H = hidden_dim
    keys = iter(jax.random.split(key, 32))

    def lin(din, dout):
        scale = 1.0 / (din ** 0.5)
        w = jax.random.uniform(next(keys), (din, dout), jnp.float32, -scale, scale)
        b = jax.random.uniform(next(keys), (1, dout), jnp.float32, -scale, scale)
        return w, b

    ge_w1, ge_b1 = lin(input_dim, H)
    ge_g = 1.0 + 0.1 * jax.random.normal(next(keys), (1, H), jnp.float32)
    ge_beta = 0.1 * jax.random.normal(next(keys), (1, H), jnp.float32)
    ge_w2, ge_b2 = lin(H, H)

    w_ir, b_ir = lin(H, H)
    w_iz, b_iz = lin(H, H)
    w_in_, b_in_ = lin(H, H)
    w_hr, b_hr = lin(H, H)
    w_hz, b_hz = lin(H, H)
    w_hn, b_hn = lin(H, H)

    sd_w1, sd_b1 = lin(H, H)
    sd_g = 1.0 + 0.1 * jax.random.normal(next(keys), (1, H), jnp.float32)
    sd_beta = 0.1 * jax.random.normal(next(keys), (1, H), jnp.float32)
    sd_w2, sd_b2 = lin(H, input_dim)

    sp_w1, sp_b1 = lin(H, H // 2)
    sp_w2, sp_b2 = lin(H // 2, 1)

    return (ge_w1, ge_b1, ge_g, ge_beta, ge_w2, ge_b2,
            w_ir, w_iz, w_in_, b_ir, b_iz, b_in_,
            w_hr, w_hz, w_hn, b_hr, b_hz, b_hn,
            sd_w1, sd_b1, sd_g, sd_beta, sd_w2, sd_b2,
            sp_w1, sp_b1, sp_w2, sp_b2)


def reference(goal, state, params, max_subgoals):
    """Pure-JAX mirror of the PyTorch SubgoalDecomposer.forward for validation."""
    (ge_w1, ge_b1, ge_g, ge_beta, ge_w2, ge_b2,
     w_ir, w_iz, w_in_, b_ir, b_iz, b_in_,
     w_hr, w_hz, w_hn, b_hr, b_hz, b_hn,
     sd_w1, sd_b1, sd_g, sd_beta, sd_w2, sd_b2,
     sp_w1, sp_b1, sp_w2, sp_b2) = params

    def ln(x, g, b, eps=1e-5):
        mu = jnp.mean(x, -1, keepdims=True)
        var = jnp.mean((x - mu) ** 2, -1, keepdims=True)
        return (x - mu) * jax.lax.rsqrt(var + eps) * g + b

    x = jnp.maximum(ln(goal @ ge_w1 + ge_b1, ge_g, ge_beta), 0.0)
    ge = x @ ge_w2 + ge_b2
    h = state
    sgs, hs, sps = [], [], []
    for _ in range(max_subgoals):
        r = jax.nn.sigmoid(ge @ w_ir + b_ir + h @ w_hr + b_hr)
        z = jax.nn.sigmoid(ge @ w_iz + b_iz + h @ w_hz + b_hz)
        n = jnp.tanh(ge @ w_in_ + b_in_ + r * (h @ w_hn + b_hn))
        h = (1.0 - z) * n + z * h
        sp = jax.nn.sigmoid(jnp.maximum(h @ sp_w1 + sp_b1, 0.0) @ sp_w2 + sp_b2)
        d = jnp.maximum(ln(h @ sd_w1 + sd_b1, sd_g, sd_beta), 0.0)
        sgs.append(d @ sd_w2 + sd_b2)
        hs.append(h)
        sps.append(sp)
    return jnp.stack(sgs, 1), jnp.stack(hs, 1), jnp.concatenate(sps, -1)


if __name__ == "__main__":
    B, D_IN, HID, S = 2, 32, 32, 5

    key = jax.random.PRNGKey(0)
    kg, ks, kp = jax.random.split(key, 3)
    goal = jax.random.normal(kg, (B, D_IN), jnp.float32)
    state = jax.random.normal(ks, (B, HID), jnp.float32)
    params = init_params(kp, D_IN, HID)

    # pack ONCE (init-time), off the per-call path
    w_slab, v_slab = jax.block_until_ready(pack_params(params))

    out = subgoal_decomposer(goal, state, w_slab, v_slab, max_subgoals=S)
    out = jax.block_until_ready(out)
    subgoals, embeds, stops = out

    assert subgoals.shape == (B, S, D_IN)
    assert embeds.shape == (B, S, HID)
    assert stops.shape == (B, S)

    ref = reference(goal, state, params, S)
    for got, want in zip(out, ref):
        assert jnp.allclose(got, want, rtol=5e-3, atol=5e-3), float(jnp.abs(got - want).max())

    print("KERNEL_OK")
</pallas_src>

<mosaic_0001>
module attributes {stable_mosaic.version = 11 : i64} {
  func.func @subgoal_kernel(%arg0: memref<2x32xf32, #tpu.memory_space<vmem>>, %arg1: memref<2x32xf32, #tpu.memory_space<vmem>>, %arg2: memref<32x304xf32, #tpu.memory_space<vmem>>, %arg3: memref<11x128xf32, #tpu.memory_space<vmem>>, %arg4: memref<2x160xf32, #tpu.memory_space<vmem>>, %arg5: memref<2x160xf32, #tpu.memory_space<vmem>>, %arg6: memref<2x5xf32, #tpu.memory_space<vmem>>) attributes {dimension_semantics = [], scalar_prefetch = 0 : i64, scratch_operands = 0 : i64, tpu.core_type = #tpu.core_type<tc>} {
    %c0 = arith.constant 0 : index
    %c0_0 = arith.constant 0 : index
    %0 = vector.load %arg0[%c0, %c0_0] : memref<2x32xf32, #tpu.memory_space<vmem>>, vector<2x32xf32>
    %c0_1 = arith.constant 0 : index
    %c0_2 = arith.constant 0 : index
    %1 = vector.load %arg1[%c0_1, %c0_2] : memref<2x32xf32, #tpu.memory_space<vmem>>, vector<2x32xf32>
    %c0_3 = arith.constant 0 : index
    %c0_4 = arith.constant 0 : index
    %2 = vector.load %arg2[%c0_3, %c0_4] : memref<32x304xf32, #tpu.memory_space<vmem>>, vector<32x304xf32>
    %3 = vector.extract_strided_slice %2 {offsets = [0, 0], sizes = [32, 128], strides = [1, 1]} : vector<32x304xf32> to vector<32x128xf32>
    %4 = vector.extract_strided_slice %2 {offsets = [0, 128], sizes = [32, 96], strides = [1, 1]} : vector<32x304xf32> to vector<32x96xf32>
    %5 = vector.extract_strided_slice %2 {offsets = [0, 224], sizes = [32, 32], strides = [1, 1]} : vector<32x304xf32> to vector<32x32xf32>
    %6 = vector.extract_strided_slice %2 {offsets = [0, 256], sizes = [32, 32], strides = [1, 1]} : vector<32x304xf32> to vector<32x32xf32>
    %7 = vector.extract_strided_slice %2 {offsets = [0, 288], sizes = [32, 16], strides = [1, 1]} : vector<32x304xf32> to vector<32x16xf32>
    %c0_5 = arith.constant 0 : index
    %c0_6 = arith.constant 0 : index
    %8 = vector.load %arg3[%c0_5, %c0_6] : memref<11x128xf32, #tpu.memory_space<vmem>>, vector<11x128xf32>
    %9 = vector.extract_strided_slice %8 {offsets = [0, 0], sizes = [1, 128], strides = [1, 1]} : vector<11x128xf32> to vector<1x128xf32>
    %10 = vector.shape_cast %9 : vector<1x128xf32> to vector<1x128xf32>
    %11 = vector.broadcast %10 : vector<1x128xf32> to vector<2x128xf32>
    %12 = vector.extract_strided_slice %8 {offsets = [1, 0], sizes = [1, 96], strides = [1, 1]} : vector<11x128xf32> to vector<1x96xf32>
    %13 = vector.extract_strided_slice %8 {offsets = [2, 0], sizes = [1, 32], strides = [1, 1]} : vector<11x128xf32> to vector<1x32xf32>
    %14 = vector.extract_strided_slice %8 {offsets = [3, 0], sizes = [1, 32], strides = [1, 1]} : vector<11x128xf32> to vector<1x32xf32>
    %15 = vector.extract_strided_slice %8 {offsets = [4, 0], sizes = [1, 32], strides = [1, 1]} : vector<11x128xf32> to vector<1x32xf32>
    %16 = vector.extract_strided_slice %8 {offsets = [5, 0], sizes = [1, 32], strides = [1, 1]} : vector<11x128xf32> to vector<1x32xf32>
    %17 = vector.shape_cast %16 : vector<1x32xf32> to vector<1x32xf32>
    %18 = vector.broadcast %17 : vector<1x32xf32> to vector<2x32xf32>
    %19 = vector.extract_strided_slice %8 {offsets = [6, 0], sizes = [1, 32], strides = [1, 1]} : vector<11x128xf32> to vector<1x32xf32>
    %20 = vector.shape_cast %19 : vector<1x32xf32> to vector<1x32xf32>
    %21 = vector.broadcast %20 : vector<1x32xf32> to vector<2x32xf32>
    %22 = vector.extract_strided_slice %8 {offsets = [7, 0], sizes = [1, 32], strides = [1, 1]} : vector<11x128xf32> to vector<1x32xf32>
    %23 = vector.shape_cast %22 : vector<1x32xf32> to vector<1x32xf32>
    %24 = vector.broadcast %23 : vector<1x32xf32> to vector<2x32xf32>
    %25 = vector.extract_strided_slice %8 {offsets = [8, 0], sizes = [1, 16], strides = [1, 1]} : vector<11x128xf32> to vector<1x16xf32>
    %26 = vector.shape_cast %25 : vector<1x16xf32> to vector<1x16xf32>
    %27 = vector.broadcast %26 : vector<1x16xf32> to vector<2x16xf32>
    %28 = vector.extract_strided_slice %8 {offsets = [9, 0], sizes = [1, 16], strides = [1, 1]} : vector<11x128xf32> to vector<1x16xf32>
    %29 = vector.shape_cast %28 : vector<1x16xf32> to vector<1x16xf32>
    %30 = vector.broadcast %29 : vector<1x16xf32> to vector<2x16xf32>
    %31 = vector.extract_strided_slice %8 {offsets = [10, 0], sizes = [1, 1], strides = [1, 1]} : vector<11x128xf32> to vector<1x1xf32>
    %32 = vector.shape_cast %31 : vector<1x1xf32> to vector<1x1xf32>
    %33 = vector.broadcast %32 : vector<1x1xf32> to vector<2x1xf32>
    %cst = arith.constant dense<0.000000e+00> : vector<2x32xf32>
    %34 = tpu.matmul %0, %5, %cst {dimension_numbers = #tpu.dot_dimension_numbers<[1], [0], [0], [1], [0, 0, 1, 1], [], []>} : vector<2x32xf32>, vector<32x32xf32>, vector<2x32xf32> -> vector<2x32xf32>
    %35 = vector.broadcast %13 : vector<1x32xf32> to vector<2x32xf32>
    %36 = arith.addf %34, %35 : vector<2x32xf32>
    %cst_7 = arith.constant dense<0.000000e+00> : vector<2xf32>
    %37 = vector.multi_reduction <add>, %36, %cst_7 [1] : vector<2x32xf32> to vector<2xf32>
    %38 = vector.shape_cast %37 : vector<2xf32> to vector<2x1xf32>
    %cst_8 = arith.constant 3.200000e+01 : f32
    %39 = vector.broadcast %cst_8 : f32 to vector<2x1xf32>
    %40 = arith.divf %38, %39 : vector<2x1xf32>
    %41 = arith.mulf %36, %36 : vector<2x32xf32>
    %cst_9 = arith.constant dense<0.000000e+00> : vector<2xf32>
    %42 = vector.multi_reduction <add>, %41, %cst_9 [1] : vector<2x32xf32> to vector<2xf32>
    %43 = vector.shape_cast %42 : vector<2xf32> to vector<2x1xf32>
    %cst_10 = arith.constant 3.200000e+01 : f32
    %44 = vector.broadcast %cst_10 : f32 to vector<2x1xf32>
    %45 = arith.divf %43, %44 : vector<2x1xf32>
    %46 = arith.mulf %40, %40 : vector<2x1xf32>
    %47 = arith.subf %45, %46 : vector<2x1xf32>
    %48 = vector.broadcast %40 : vector<2x1xf32> to vector<2x32xf32>
    %49 = arith.subf %36, %48 : vector<2x32xf32>
    %cst_11 = arith.constant 9.99999974E-6 : f32
    %50 = vector.broadcast %cst_11 : f32 to vector<2x1xf32>
    %51 = arith.addf %47, %50 : vector<2x1xf32>
    %52 = math.rsqrt %51 : vector<2x1xf32>
    %53 = vector.broadcast %52 : vector<2x1xf32> to vector<2x32xf32>
    %54 = arith.mulf %49, %53 : vector<2x32xf32>
    %55 = vector.broadcast %14 : vector<1x32xf32> to vector<2x32xf32>
    %56 = arith.mulf %54, %55 : vector<2x32xf32>
    %57 = vector.broadcast %15 : vector<1x32xf32> to vector<2x32xf32>
    %58 = arith.addf %56, %57 : vector<2x32xf32>
    %cst_12 = arith.constant 0.000000e+00 : f32
    %59 = vector.broadcast %cst_12 : f32 to vector<2x32xf32>
    %60 = arith.maximumf %58, %59 : vector<2x32xf32>
    %cst_13 = arith.constant dense<0.000000e+00> : vector<2x96xf32>
    %61 = tpu.matmul %60, %4, %cst_13 {dimension_numbers = #tpu.dot_dimension_numbers<[1], [0], [0], [1], [0, 0, 1, 1], [], []>} : vector<2x32xf32>, vector<32x96xf32>, vector<2x96xf32> -> vector<2x96xf32>
    %62 = vector.broadcast %12 : vector<1x96xf32> to vector<2x96xf32>
    %63 = arith.addf %61, %62 : vector<2x96xf32>
    %64 = vector.extract_strided_slice %63 {offsets = [0, 0], sizes = [2, 64], strides = [1, 1]} : vector<2x96xf32> to vector<2x64xf32>
    %65 = vector.extract_strided_slice %63 {offsets = [0, 64], sizes = [2, 32], strides = [1, 1]} : vector<2x96xf32> to vector<2x32xf32>
    %cst_14 = arith.constant dense<0.000000e+00> : vector<2x128xf32>
    %66 = tpu.matmul %1, %3, %cst_14 {dimension_numbers = #tpu.dot_dimension_numbers<[1], [0], [0], [1], [0, 0, 1, 1], [], []>} : vector<2x32xf32>, vector<32x128xf32>, vector<2x128xf32> -> vector<2x128xf32>
    %67 = arith.addf %66, %11 : vector<2x128xf32>
    %68 = vector.extract_strided_slice %67 {offsets = [0, 0], sizes = [2, 64], strides = [1, 1]} : vector<2x128xf32> to vector<2x64xf32>
    %69 = arith.addf %64, %68 : vector<2x64xf32>
    %70 = arith.negf %69 : vector<2x64xf32>
    %71 = math.exp %70 : vector<2x64xf32>
    %cst_15 = arith.constant 1.000000e+00 : f32
    %72 = vector.broadcast %cst_15 : f32 to vector<2x64xf32>
    %73 = arith.addf %72, %71 : vector<2x64xf32>
    %74 = arith.divf %72, %73 : vector<2x64xf32>
    %75 = vector.extract_strided_slice %74 {offsets = [0, 0], sizes = [2, 32], strides = [1, 1]} : vector<2x64xf32> to vector<2x32xf32>
    %76 = vector.extract_strided_slice %74 {offsets = [0, 32], sizes = [2, 32], strides = [1, 1]} : vector<2x64xf32> to vector<2x32xf32>
    %77 = vector.extract_strided_slice %67 {offsets = [0, 64], sizes = [2, 32], strides = [1, 1]} : vector<2x128xf32> to vector<2x32xf32>
    %78 = arith.mulf %75, %77 : vector<2x32xf32>
    %79 = arith.addf %65, %78 : vector<2x32xf32>
    %80 = math.tanh %79 : vector<2x32xf32>
    %cst_16 = arith.constant 1.000000e+00 : f32
    %81 = vector.broadcast %cst_16 : f32 to vector<2x32xf32>
    %82 = arith.subf %81, %76 : vector<2x32xf32>
    %83 = arith.mulf %82, %80 : vector<2x32xf32>
    %84 = arith.mulf %76, %1 : vector<2x32xf32>
    %85 = arith.addf %83, %84 : vector<2x32xf32>
    %cst_17 = arith.constant dense<0.000000e+00> : vector<2x128xf32>
    %86 = tpu.matmul %85, %3, %cst_17 {dimension_numbers = #tpu.dot_dimension_numbers<[1], [0], [0], [1], [0, 0, 1, 1], [], []>} : vector<2x32xf32>, vector<32x128xf32>, vector<2x128xf32> -> vector<2x128xf32>
    %87 = arith.addf %86, %11 : vector<2x128xf32>
    %88 = vector.extract_strided_slice %87 {offsets = [0, 96], sizes = [2, 32], strides = [1, 1]} : vector<2x128xf32> to vector<2x32xf32>
    %cst_18 = arith.constant dense<0.000000e+00> : vector<2x16xf32>
    %89 = tpu.matmul %85, %7, %cst_18 {dimension_numbers = #tpu.dot_dimension_numbers<[1], [0], [0], [1], [0, 0, 1, 1], [], []>} : vector<2x32xf32>, vector<32x16xf32>, vector<2x16xf32> -> vector<2x16xf32>
    %90 = arith.addf %89, %27 : vector<2x16xf32>
    %cst_19 = arith.constant 0.000000e+00 : f32
    %91 = vector.broadcast %cst_19 : f32 to vector<2x16xf32>
    %92 = arith.maximumf %90, %91 : vector<2x16xf32>
    %93 = arith.mulf %92, %30 : vector<2x16xf32>
    %cst_20 = arith.constant dense<0.000000e+00> : vector<2xf32>
    %94 = vector.multi_reduction <add>, %93, %cst_20 [1] : vector<2x16xf32> to vector<2xf32>
    %95 = vector.shape_cast %94 : vector<2xf32> to vector<2x1xf32>
    %96 = arith.addf %95, %33 : vector<2x1xf32>
    %97 = arith.negf %96 : vector<2x1xf32>
    %98 = math.exp %97 : vector<2x1xf32>
    %cst_21 = arith.constant 1.000000e+00 : f32
    %99 = vector.broadcast %cst_21 : f32 to vector<2x1xf32>
    %100 = arith.addf %99, %98 : vector<2x1xf32>
    %101 = arith.divf %99, %100 : vector<2x1xf32>
    %cst_22 = arith.constant dense<0.000000e+00> : vector<2xf32>
    %102 = vector.multi_reduction <add>, %88, %cst_22 [1] : vector<2x32xf32> to vector<2xf32>
    %103 = vector.shape_cast %102 : vector<2xf32> to vector<2x1xf32>
    %cst_23 = arith.constant 3.200000e+01 : f32
    %104 = vector.broadcast %cst_23 : f32 to vector<2x1xf32>
    %105 = arith.divf %103, %104 : vector<2x1xf32>
    %106 = arith.mulf %88, %88 : vector<2x32xf32>
    %cst_24 = arith.constant dense<0.000000e+00> : vector<2xf32>
    %107 = vector.multi_reduction <add>, %106, %cst_24 [1] : vector<2x32xf32> to vector<2xf32>
    %108 = vector.shape_cast %107 : vector<2xf32> to vector<2x1xf32>
    %cst_25 = arith.constant 3.200000e+01 : f32
    %109 = vector.broadcast %cst_25 : f32 to vector<2x1xf32>
    %110 = arith.divf %108, %109 : vector<2x1xf32>
    %111 = arith.mulf %105, %105 : vector<2x1xf32>
    %112 = arith.subf %110, %111 : vector<2x1xf32>
    %113 = vector.broadcast %105 : vector<2x1xf32> to vector<2x32xf32>
    %114 = arith.subf %88, %113 : vector<2x32xf32>
    %cst_26 = arith.constant 9.99999974E-6 : f32
    %115 = vector.broadcast %cst_26 : f32 to vector<2x1xf32>
    %116 = arith.addf %112, %115 : vector<2x1xf32>
    %117 = math.rsqrt %116 : vector<2x1xf32>
    %118 = vector.broadcast %117 : vector<2x1xf32> to vector<2x32xf32>
    %119 = arith.mulf %114, %118 : vector<2x32xf32>
    %120 = arith.mulf %119, %18 : vector<2x32xf32>
    %121 = arith.addf %120, %21 : vector<2x32xf32>
    %cst_27 = arith.constant 0.000000e+00 : f32
    %122 = vector.broadcast %cst_27 : f32 to vector<2x32xf32>
    %123 = arith.maximumf %121, %122 : vector<2x32xf32>
    %cst_28 = arith.constant dense<0.000000e+00> : vector<2x32xf32>
    %124 = tpu.matmul %123, %6, %cst_28 {dimension_numbers = #tpu.dot_dimension_numbers<[1], [0], [0], [1], [0, 0, 1, 1], [], []>} : vector<2x32xf32>, vector<32x32xf32>, vector<2x32xf32> -> vector<2x32xf32>
    %125 = arith.addf %124, %24 : vector<2x32xf32>
    %126 = vector.extract_strided_slice %87 {offsets = [0, 0], sizes = [2, 64], strides = [1, 1]} : vector<2x128xf32> to vector<2x64xf32>
    %127 = arith.addf %64, %126 : vector<2x64xf32>
    %128 = arith.negf %127 : vector<2x64xf32>
    %129 = math.exp %128 : vector<2x64xf32>
    %cst_29 = arith.constant 1.000000e+00 : f32
    %130 = vector.broadcast %cst_29 : f32 to vector<2x64xf32>
    %131 = arith.addf %130, %129 : vector<2x64xf32>
    %132 = arith.divf %130, %131 : vector<2x64xf32>
    %133 = vector.extract_strided_slice %132 {offsets = [0, 0], sizes = [2, 32], strides = [1, 1]} : vector<2x64xf32> to vector<2x32xf32>
    %134 = vector.extract_strided_slice %132 {offsets = [0, 32], sizes = [2, 32], strides = [1, 1]} : vector<2x64xf32> to vector<2x32xf32>
    %135 = vector.extract_strided_slice %87 {offsets = [0, 64], sizes = [2, 32], strides = [1, 1]} : vector<2x128xf32> to vector<2x32xf32>
    %136 = arith.mulf %133, %135 : vector<2x32xf32>
    %137 = arith.addf %65, %136 : vector<2x32xf32>
    %138 = math.tanh %137 : vector<2x32xf32>
    %cst_30 = arith.constant 1.000000e+00 : f32
    %139 = vector.broadcast %cst_30 : f32 to vector<2x32xf32>
    %140 = arith.subf %139, %134 : vector<2x32xf32>
    %141 = arith.mulf %140, %138 : vector<2x32xf32>
    %142 = arith.mulf %134, %85 : vector<2x32xf32>
    %143 = arith.addf %141, %142 : vector<2x32xf32>
    %cst_31 = arith.constant dense<0.000000e+00> : vector<2x128xf32>
    %144 = tpu.matmul %143, %3, %cst_31 {dimension_numbers = #tpu.dot_dimension_numbers<[1], [0], [0], [1], [0, 0, 1, 1], [], []>} : vector<2x32xf32>, vector<32x128xf32>, vector<2x128xf32> -> vector<2x128xf32>
    %145 = arith.addf %144, %11 : vector<2x128xf32>
    %146 = vector.extract_strided_slice %145 {offsets = [0, 96], sizes = [2, 32], strides = [1, 1]} : vector<2x128xf32> to vector<2x32xf32>
    %cst_32 = arith.constant dense<0.000000e+00> : vector<2x16xf32>
    %147 = tpu.matmul %143, %7, %cst_32 {dimension_numbers = #tpu.dot_dimension_numbers<[1], [0], [0], [1], [0, 0, 1, 1], [], []>} : vector<2x32xf32>, vector<32x16xf32>, vector<2x16xf32> -> vector<2x16xf32>
    %148 = arith.addf %147, %27 : vector<2x16xf32>
    %cst_33 = arith.constant 0.000000e+00 : f32
    %149 = vector.broadcast %cst_33 : f32 to vector<2x16xf32>
    %150 = arith.maximumf %148, %149 : vector<2x16xf32>
    %151 = arith.mulf %150, %30 : vector<2x16xf32>
    %cst_34 = arith.constant dense<0.000000e+00> : vector<2xf32>
    %152 = vector.multi_reduction <add>, %151, %cst_34 [1] : vector<2x16xf32> to vector<2xf32>
    %153 = vector.shape_cast %152 : vector<2xf32> to vector<2x1xf32>
    %154 = arith.addf %153, %33 : vector<2x1xf32>
    %155 = arith.negf %154 : vector<2x1xf32>
    %156 = math.exp %155 : vector<2x1xf32>
    %cst_35 = arith.constant 1.000000e+00 : f32
    %157 = vector.broadcast %cst_35 : f32 to vector<2x1xf32>
    %158 = arith.addf %157, %156 : vector<2x1xf32>
    %159 = arith.divf %157, %158 : vector<2x1xf32>
    %cst_36 = arith.constant dense<0.000000e+00> : vector<2xf32>
    %160 = vector.multi_reduction <add>, %146, %cst_36 [1] : vector<2x32xf32> to vector<2xf32>
    %161 = vector.shape_cast %160 : vector<2xf32> to vector<2x1xf32>
    %cst_37 = arith.constant 3.200000e+01 : f32
    %162 = vector.broadcast %cst_37 : f32 to vector<2x1xf32>
    %163 = arith.divf %161, %162 : vector<2x1xf32>
    %164 = arith.mulf %146, %146 : vector<2x32xf32>
    %cst_38 = arith.constant dense<0.000000e+00> : vector<2xf32>
    %165 = vector.multi_reduction <add>, %164, %cst_38 [1] : vector<2x32xf32> to vector<2xf32>
    %166 = vector.shape_cast %165 : vector<2xf32> to vector<2x1xf32>
    %cst_39 = arith.constant 3.200000e+01 : f32
    %167 = vector.broadcast %cst_39 : f32 to vector<2x1xf32>
    %168 = arith.divf %166, %167 : vector<2x1xf32>
    %169 = arith.mulf %163, %163 : vector<2x1xf32>
    %170 = arith.subf %168, %169 : vector<2x1xf32>
    %171 = vector.broadcast %163 : vector<2x1xf32> to vector<2x32xf32>
    %172 = arith.subf %146, %171 : vector<2x32xf32>
    %cst_40 = arith.constant 9.99999974E-6 : f32
    %173 = vector.broadcast %cst_40 : f32 to vector<2x1xf32>
    %174 = arith.addf %170, %173 : vector<2x1xf32>
    %175 = math.rsqrt %174 : vector<2x1xf32>
    %176 = vector.broadcast %175 : vector<2x1xf32> to vector<2x32xf32>
    %177 = arith.mulf %172, %176 : vector<2x32xf32>
    %178 = arith.mulf %177, %18 : vector<2x32xf32>
    %179 = arith.addf %178, %21 : vector<2x32xf32>
    %cst_41 = arith.constant 0.000000e+00 : f32
    %180 = vector.broadcast %cst_41 : f32 to vector<2x32xf32>
    %181 = arith.maximumf %179, %180 : vector<2x32xf32>
    %cst_42 = arith.constant dense<0.000000e+00> : vector<2x32xf32>
    %182 = tpu.matmul %181, %6, %cst_42 {dimension_numbers = #tpu.dot_dimension_numbers<[1], [0], [0], [1], [0, 0, 1, 1], [], []>} : vector<2x32xf32>, vector<32x32xf32>, vector<2x32xf32> -> vector<2x32xf32>
    %183 = arith.addf %182, %24 : vector<2x32xf32>
    %184 = vector.extract_strided_slice %145 {offsets = [0, 0], sizes = [2, 64], strides = [1, 1]} : vector<2x128xf32> to vector<2x64xf32>
    %185 = arith.addf %64, %184 : vector<2x64xf32>
    %186 = arith.negf %185 : vector<2x64xf32>
    %187 = math.exp %186 : vector<2x64xf32>
    %cst_43 = arith.constant 1.000000e+00 : f32
    %188 = vector.broadcast %cst_43 : f32 to vector<2x64xf32>
    %189 = arith.addf %188, %187 : vector<2x64xf32>
    %190 = arith.divf %188, %189 : vector<2x64xf32>
    %191 = vector.extract_strided_slice %190 {offsets = [0, 0], sizes = [2, 32], strides = [1, 1]} : vector<2x64xf32> to vector<2x32xf32>
    %192 = vector.extract_strided_slice %190 {offsets = [0, 32], sizes = [2, 32], strides = [1, 1]} : vector<2x64xf32> to vector<2x32xf32>
    %193 = vector.extract_strided_slice %145 {offsets = [0, 64], sizes = [2, 32], strides = [1, 1]} : vector<2x128xf32> to vector<2x32xf32>
    %194 = arith.mulf %191, %193 : vector<2x32xf32>
    %195 = arith.addf %65, %194 : vector<2x32xf32>
    %196 = math.tanh %195 : vector<2x32xf32>
    %cst_44 = arith.constant 1.000000e+00 : f32
    %197 = vector.broadcast %cst_44 : f32 to vector<2x32xf32>
    %198 = arith.subf %197, %192 : vector<2x32xf32>
    %199 = arith.mulf %198, %196 : vector<2x32xf32>
    %200 = arith.mulf %192, %143 : vector<2x32xf32>
    %201 = arith.addf %199, %200 : vector<2x32xf32>
    %cst_45 = arith.constant dense<0.000000e+00> : vector<2x128xf32>
    %202 = tpu.matmul %201, %3, %cst_45 {dimension_numbers = #tpu.dot_dimension_numbers<[1], [0], [0], [1], [0, 0, 1, 1], [], []>} : vector<2x32xf32>, vector<32x128xf32>, vector<2x128xf32> -> vector<2x128xf32>
    %203 = arith.addf %202, %11 : vector<2x128xf32>
    %204 = vector.extract_strided_slice %203 {offsets = [0, 96], sizes = [2, 32], strides = [1, 1]} : vector<2x128xf32> to vector<2x32xf32>
    %cst_46 = arith.constant dense<0.000000e+00> : vector<2x16xf32>
    %205 = tpu.matmul %201, %7, %cst_46 {dimension_numbers = #tpu.dot_dimension_numbers<[1], [0], [0], [1], [0, 0, 1, 1], [], []>} : vector<2x32xf32>, vector<32x16xf32>, vector<2x16xf32> -> vector<2x16xf32>
    %206 = arith.addf %205, %27 : vector<2x16xf32>
    %cst_47 = arith.constant 0.000000e+00 : f32
    %207 = vector.broadcast %cst_47 : f32 to vector<2x16xf32>
    %208 = arith.maximumf %206, %207 : vector<2x16xf32>
    %209 = arith.mulf %208, %30 : vector<2x16xf32>
    %cst_48 = arith.constant dense<0.000000e+00> : vector<2xf32>
    %210 = vector.multi_reduction <add>, %209, %cst_48 [1] : vector<2x16xf32> to vector<2xf32>
    %211 = vector.shape_cast %210 : vector<2xf32> to vector<2x1xf32>
    %212 = arith.addf %211, %33 : vector<2x1xf32>
    %213 = arith.negf %212 : vector<2x1xf32>
    %214 = math.exp %213 : vector<2x1xf32>
    %cst_49 = arith.constant 1.000000e+00 : f32
    %215 = vector.broadcast %cst_49 : f32 to vector<2x1xf32>
    %216 = arith.addf %215, %214 : vector<2x1xf32>
    %217 = arith.divf %215, %216 : vector<2x1xf32>
    %cst_50 = arith.constant dense<0.000000e+00> : vector<2xf32>
    %218 = vector.multi_reduction <add>, %204, %cst_50 [1] : vector<2x32xf32> to vector<2xf32>
    %219 = vector.shape_cast %218 : vector<2xf32> to vector<2x1xf32>
    %cst_51 = arith.constant 3.200000e+01 : f32
    %220 = vector.broadcast %cst_51 : f32 to vector<2x1xf32>
    %221 = arith.divf %219, %220 : vector<2x1xf32>
    %222 = arith.mulf %204, %204 : vector<2x32xf32>
    %cst_52 = arith.constant dense<0.000000e+00> : vector<2xf32>
    %223 = vector.multi_reduction <add>, %222, %cst_52 [1] : vector<2x32xf32> to vector<2xf32>
    %224 = vector.shape_cast %223 : vector<2xf32> to vector<2x1xf32>
    %cst_53 = arith.constant 3.200000e+01 : f32
    %225 = vector.broadcast %cst_53 : f32 to vector<2x1xf32>
    %226 = arith.divf %224, %225 : vector<2x1xf32>
    %227 = arith.mulf %221, %221 : vector<2x1xf32>
    %228 = arith.subf %226, %227 : vector<2x1xf32>
    %229 = vector.broadcast %221 : vector<2x1xf32> to vector<2x32xf32>
    %230 = arith.subf %204, %229 : vector<2x32xf32>
    %cst_54 = arith.constant 9.99999974E-6 : f32
    %231 = vector.broadcast %cst_54 : f32 to vector<2x1xf32>
    %232 = arith.addf %228, %231 : vector<2x1xf32>
    %233 = math.rsqrt %232 : vector<2x1xf32>
    %234 = vector.broadcast %233 : vector<2x1xf32> to vector<2x32xf32>
    %235 = arith.mulf %230, %234 : vector<2x32xf32>
    %236 = arith.mulf %235, %18 : vector<2x32xf32>
    %237 = arith.addf %236, %21 : vector<2x32xf32>
    %cst_55 = arith.constant 0.000000e+00 : f32
    %238 = vector.broadcast %cst_55 : f32 to vector<2x32xf32>
    %239 = arith.maximumf %237, %238 : vector<2x32xf32>
    %cst_56 = arith.constant dense<0.000000e+00> : vector<2x32xf32>
    %240 = tpu.matmul %239, %6, %cst_56 {dimension_numbers = #tpu.dot_dimension_numbers<[1], [0], [0], [1], [0, 0, 1, 1], [], []>} : vector<2x32xf32>, vector<32x32xf32>, vector<2x32xf32> -> vector<2x32xf32>
    %241 = arith.addf %240, %24 : vector<2x32xf32>
    %242 = vector.extract_strided_slice %203 {offsets = [0, 0], sizes = [2, 64], strides = [1, 1]} : vector<2x128xf32> to vector<2x64xf32>
    %243 = arith.addf %64, %242 : vector<2x64xf32>
    %244 = arith.negf %243 : vector<2x64xf32>
    %245 = math.exp %244 : vector<2x64xf32>
    %cst_57 = arith.constant 1.000000e+00 : f32
    %246 = vector.broadcast %cst_57 : f32 to vector<2x64xf32>
    %247 = arith.addf %246, %245 : vector<2x64xf32>
    %248 = arith.divf %246, %247 : vector<2x64xf32>
    %249 = vector.extract_strided_slice %248 {offsets = [0, 0], sizes = [2, 32], strides = [1, 1]} : vector<2x64xf32> to vector<2x32xf32>
    %250 = vector.extract_strided_slice %248 {offsets = [0, 32], sizes = [2, 32], strides = [1, 1]} : vector<2x64xf32> to vector<2x32xf32>
    %251 = vector.extract_strided_slice %203 {offsets = [0, 64], sizes = [2, 32], strides = [1, 1]} : vector<2x128xf32> to vector<2x32xf32>
    %252 = arith.mulf %249, %251 : vector<2x32xf32>
    %253 = arith.addf %65, %252 : vector<2x32xf32>
    %254 = math.tanh %253 : vector<2x32xf32>
    %cst_58 = arith.constant 1.000000e+00 : f32
    %255 = vector.broadcast %cst_58 : f32 to vector<2x32xf32>
    %256 = arith.subf %255, %250 : vector<2x32xf32>
    %257 = arith.mulf %256, %254 : vector<2x32xf32>
    %258 = arith.mulf %250, %201 : vector<2x32xf32>
    %259 = arith.addf %257, %258 : vector<2x32xf32>
    %cst_59 = arith.constant dense<0.000000e+00> : vector<2x128xf32>
    %260 = tpu.matmul %259, %3, %cst_59 {dimension_numbers = #tpu.dot_dimension_numbers<[1], [0], [0], [1], [0, 0, 1, 1], [], []>} : vector<2x32xf32>, vector<32x128xf32>, vector<2x128xf32> -> vector<2x128xf32>
    %261 = arith.addf %260, %11 : vector<2x128xf32>
    %262 = vector.extract_strided_slice %261 {offsets = [0, 96], sizes = [2, 32], strides = [1, 1]} : vector<2x128xf32> to vector<2x32xf32>
    %cst_60 = arith.constant dense<0.000000e+00> : vector<2x16xf32>
    %263 = tpu.matmul %259, %7, %cst_60 {dimension_numbers = #tpu.dot_dimension_numbers<[1], [0], [0], [1], [0, 0, 1, 1], [], []>} : vector<2x32xf32>, vector<32x16xf32>, vector<2x16xf32> -> vector<2x16xf32>
    %264 = arith.addf %263, %27 : vector<2x16xf32>
    %cst_61 = arith.constant 0.000000e+00 : f32
    %265 = vector.broadcast %cst_61 : f32 to vector<2x16xf32>
    %266 = arith.maximumf %264, %265 : vector<2x16xf32>
    %267 = arith.mulf %266, %30 : vector<2x16xf32>
    %cst_62 = arith.constant dense<0.000000e+00> : vector<2xf32>
    %268 = vector.multi_reduction <add>, %267, %cst_62 [1] : vector<2x16xf32> to vector<2xf32>
    %269 = vector.shape_cast %268 : vector<2xf32> to vector<2x1xf32>
    %270 = arith.addf %269, %33 : vector<2x1xf32>
    %271 = arith.negf %270 : vector<2x1xf32>
    %272 = math.exp %271 : vector<2x1xf32>
    %cst_63 = arith.constant 1.000000e+00 : f32
    %273 = vector.broadcast %cst_63 : f32 to vector<2x1xf32>
    %274 = arith.addf %273, %272 : vector<2x1xf32>
    %275 = arith.divf %273, %274 : vector<2x1xf32>
    %cst_64 = arith.constant dense<0.000000e+00> : vector<2xf32>
    %276 = vector.multi_reduction <add>, %262, %cst_64 [1] : vector<2x32xf32> to vector<2xf32>
    %277 = vector.shape_cast %276 : vector<2xf32> to vector<2x1xf32>
    %cst_65 = arith.constant 3.200000e+01 : f32
    %278 = vector.broadcast %cst_65 : f32 to vector<2x1xf32>
    %279 = arith.divf %277, %278 : vector<2x1xf32>
    %280 = arith.mulf %262, %262 : vector<2x32xf32>
    %cst_66 = arith.constant dense<0.000000e+00> : vector<2xf32>
    %281 = vector.multi_reduction <add>, %280, %cst_66 [1] : vector<2x32xf32> to vector<2xf32>
    %282 = vector.shape_cast %281 : vector<2xf32> to vector<2x1xf32>
    %cst_67 = arith.constant 3.200000e+01 : f32
    %283 = vector.broadcast %cst_67 : f32 to vector<2x1xf32>
    %284 = arith.divf %282, %283 : vector<2x1xf32>
    %285 = arith.mulf %279, %279 : vector<2x1xf32>
    %286 = arith.subf %284, %285 : vector<2x1xf32>
    %287 = vector.broadcast %279 : vector<2x1xf32> to vector<2x32xf32>
    %288 = arith.subf %262, %287 : vector<2x32xf32>
    %cst_68 = arith.constant 9.99999974E-6 : f32
    %289 = vector.broadcast %cst_68 : f32 to vector<2x1xf32>
    %290 = arith.addf %286, %289 : vector<2x1xf32>
    %291 = math.rsqrt %290 : vector<2x1xf32>
    %292 = vector.broadcast %291 : vector<2x1xf32> to vector<2x32xf32>
    %293 = arith.mulf %288, %292 : vector<2x32xf32>
    %294 = arith.mulf %293, %18 : vector<2x32xf32>
    %295 = arith.addf %294, %21 : vector<2x32xf32>
    %cst_69 = arith.constant 0.000000e+00 : f32
    %296 = vector.broadcast %cst_69 : f32 to vector<2x32xf32>
    %297 = arith.maximumf %295, %296 : vector<2x32xf32>
    %cst_70 = arith.constant dense<0.000000e+00> : vector<2x32xf32>
    %298 = tpu.matmul %297, %6, %cst_70 {dimension_numbers = #tpu.dot_dimension_numbers<[1], [0], [0], [1], [0, 0, 1, 1], [], []>} : vector<2x32xf32>, vector<32x32xf32>, vector<2x32xf32> -> vector<2x32xf32>
    %299 = arith.addf %298, %24 : vector<2x32xf32>
    %300 = vector.extract_strided_slice %261 {offsets = [0, 0], sizes = [2, 64], strides = [1, 1]} : vector<2x128xf32> to vector<2x64xf32>
    %301 = arith.addf %64, %300 : vector<2x64xf32>
    %302 = arith.negf %301 : vector<2x64xf32>
    %303 = math.exp %302 : vector<2x64xf32>
    %cst_71 = arith.constant 1.000000e+00 : f32
    %304 = vector.broadcast %cst_71 : f32 to vector<2x64xf32>
    %305 = arith.addf %304, %303 : vector<2x64xf32>
    %306 = arith.divf %304, %305 : vector<2x64xf32>
    %307 = vector.extract_strided_slice %306 {offsets = [0, 0], sizes = [2, 32], strides = [1, 1]} : vector<2x64xf32> to vector<2x32xf32>
    %308 = vector.extract_strided_slice %306 {offsets = [0, 32], sizes = [2, 32], strides = [1, 1]} : vector<2x64xf32> to vector<2x32xf32>
    %309 = vector.extract_strided_slice %261 {offsets = [0, 64], sizes = [2, 32], strides = [1, 1]} : vector<2x128xf32> to vector<2x32xf32>
    %310 = arith.mulf %307, %309 : vector<2x32xf32>
    %311 = arith.addf %65, %310 : vector<2x32xf32>
    %312 = math.tanh %311 : vector<2x32xf32>
    %cst_72 = arith.constant 1.000000e+00 : f32
    %313 = vector.broadcast %cst_72 : f32 to vector<2x32xf32>
    %314 = arith.subf %313, %308 : vector<2x32xf32>
    %315 = arith.mulf %314, %312 : vector<2x32xf32>
    %316 = arith.mulf %308, %259 : vector<2x32xf32>
    %317 = arith.addf %315, %316 : vector<2x32xf32>
    %cst_73 = arith.constant dense<0.000000e+00> : vector<2x128xf32>
    %318 = tpu.matmul %317, %3, %cst_73 {dimension_numbers = #tpu.dot_dimension_numbers<[1], [0], [0], [1], [0, 0, 1, 1], [], []>} : vector<2x32xf32>, vector<32x128xf32>, vector<2x128xf32> -> vector<2x128xf32>
    %319 = arith.addf %318, %11 : vector<2x128xf32>
    %320 = vector.extract_strided_slice %319 {offsets = [0, 96], sizes = [2, 32], strides = [1, 1]} : vector<2x128xf32> to vector<2x32xf32>
    %cst_74 = arith.constant dense<0.000000e+00> : vector<2x16xf32>
    %321 = tpu.matmul %317, %7, %cst_74 {dimension_numbers = #tpu.dot_dimension_numbers<[1], [0], [0], [1], [0, 0, 1, 1], [], []>} : vector<2x32xf32>, vector<32x16xf32>, vector<2x16xf32> -> vector<2x16xf32>
    %322 = arith.addf %321, %27 : vector<2x16xf32>
    %cst_75 = arith.constant 0.000000e+00 : f32
    %323 = vector.broadcast %cst_75 : f32 to vector<2x16xf32>
    %324 = arith.maximumf %322, %323 : vector<2x16xf32>
    %325 = arith.mulf %324, %30 : vector<2x16xf32>
    %cst_76 = arith.constant dense<0.000000e+00> : vector<2xf32>
    %326 = vector.multi_reduction <add>, %325, %cst_76 [1] : vector<2x16xf32> to vector<2xf32>
    %327 = vector.shape_cast %326 : vector<2xf32> to vector<2x1xf32>
    %328 = arith.addf %327, %33 : vector<2x1xf32>
    %329 = arith.negf %328 : vector<2x1xf32>
    %330 = math.exp %329 : vector<2x1xf32>
    %cst_77 = arith.constant 1.000000e+00 : f32
    %331 = vector.broadcast %cst_77 : f32 to vector<2x1xf32>
    %332 = arith.addf %331, %330 : vector<2x1xf32>
    %333 = arith.divf %331, %332 : vector<2x1xf32>
    %cst_78 = arith.constant dense<0.000000e+00> : vector<2xf32>
    %334 = vector.multi_reduction <add>, %320, %cst_78 [1] : vector<2x32xf32> to vector<2xf32>
    %335 = vector.shape_cast %334 : vector<2xf32> to vector<2x1xf32>
    %cst_79 = arith.constant 3.200000e+01 : f32
    %336 = vector.broadcast %cst_79 : f32 to vector<2x1xf32>
    %337 = arith.divf %335, %336 : vector<2x1xf32>
    %338 = arith.mulf %320, %320 : vector<2x32xf32>
    %cst_80 = arith.constant dense<0.000000e+00> : vector<2xf32>
    %339 = vector.multi_reduction <add>, %338, %cst_80 [1] : vector<2x32xf32> to vector<2xf32>
    %340 = vector.shape_cast %339 : vector<2xf32> to vector<2x1xf32>
    %cst_81 = arith.constant 3.200000e+01 : f32
    %341 = vector.broadcast %cst_81 : f32 to vector<2x1xf32>
    %342 = arith.divf %340, %341 : vector<2x1xf32>
    %343 = arith.mulf %337, %337 : vector<2x1xf32>
    %344 = arith.subf %342, %343 : vector<2x1xf32>
    %345 = vector.broadcast %337 : vector<2x1xf32> to vector<2x32xf32>
    %346 = arith.subf %320, %345 : vector<2x32xf32>
    %cst_82 = arith.constant 9.99999974E-6 : f32
    %347 = vector.broadcast %cst_82 : f32 to vector<2x1xf32>
    %348 = arith.addf %344, %347 : vector<2x1xf32>
    %349 = math.rsqrt %348 : vector<2x1xf32>
    %350 = vector.broadcast %349 : vector<2x1xf32> to vector<2x32xf32>
    %351 = arith.mulf %346, %350 : vector<2x32xf32>
    %352 = arith.mulf %351, %18 : vector<2x32xf32>
    %353 = arith.addf %352, %21 : vector<2x32xf32>
    %cst_83 = arith.constant 0.000000e+00 : f32
    %354 = vector.broadcast %cst_83 : f32 to vector<2x32xf32>
    %355 = arith.maximumf %353, %354 : vector<2x32xf32>
    %cst_84 = arith.constant dense<0.000000e+00> : vector<2x32xf32>
    %356 = tpu.matmul %355, %6, %cst_84 {dimension_numbers = #tpu.dot_dimension_numbers<[1], [0], [0], [1], [0, 0, 1, 1], [], []>} : vector<2x32xf32>, vector<32x32xf32>, vector<2x32xf32> -> vector<2x32xf32>
    %357 = arith.addf %356, %24 : vector<2x32xf32>
    %358 = tpu.concatenate %125, %183, %241, %299, %357 in 1 : vector<2x32xf32>, vector<2x32xf32>, vector<2x32xf32>, vector<2x32xf32>, vector<2x32xf32> -> vector<2x160xf32>
    %c0_85 = arith.constant 0 : index
    %c0_86 = arith.constant 0 : index
    %359 = vector.load %arg4[%c0_85, %c0_86] : memref<2x160xf32, #tpu.memory_space<vmem>>, vector<2x160xf32>
    tpu.vector_store %arg4[%c0_85, %c0_86], %358 {strides = array<i32>} : memref<2x160xf32, #tpu.memory_space<vmem>>, vector<2x160xf32>,
    %360 = tpu.concatenate %85, %143, %201, %259, %317 in 1 : vector<2x32xf32>, vector<2x32xf32>, vector<2x32xf32>, vector<2x32xf32>, vector<2x32xf32> -> vector<2x160xf32>
    %c0_87 = arith.constant 0 : index
    %c0_88 = arith.constant 0 : index
    %361 = vector.load %arg5[%c0_87, %c0_88] : memref<2x160xf32, #tpu.memory_space<vmem>>, vector<2x160xf32>
    tpu.vector_store %arg5[%c0_87, %c0_88], %360 {strides = array<i32>} : memref<2x160xf32, #tpu.memory_space<vmem>>, vector<2x160xf32>,
    %362 = tpu.concatenate %101, %159, %217, %275, %333 in 1 : vector<2x1xf32>, vector<2x1xf32>, vector<2x1xf32>, vector<2x1xf32>, vector<2x1xf32> -> vector<2x5xf32>
    %c0_89 = arith.constant 0 : index
    %c0_90 = arith.constant 0 : index
    %363 = vector.load %arg6[%c0_89, %c0_90] : memref<2x5xf32, #tpu.memory_space<vmem>>, vector<2x5xf32>
    tpu.vector_store %arg6[%c0_89, %c0_90], %362 {strides = array<i32>} : memref<2x5xf32, #tpu.memory_space<vmem>>, vector<2x5xf32>,
    return
  }
}

</mosaic_0001>

<llo_original>
// kernel: subgoal_decomposer.1
$region0: #{subgoal_decomposer.1}
  #allocation0 [shape = 'u32[]', space=smem, size = 0x4, offset = 0x4, fixed_abs, tag = 'smem constant byte address 0x4 - core index']
  #allocation1 [shape = 'u32[144,128]{1,0:T(1,128)}', space=vmem, size = 0x12000, scoped, tag = 'internal scratch']
  %s0 = inlined_call_operand.hbm [shape: f32[2,32], index: 0, kind: input, shape index: {}]
  %s1 = inlined_call_operand.vmem [shape: f32[2,32], index: 1, kind: input, shape index: {}]
  %s2 = inlined_call_operand.hbm [shape: f32[32,304], index: 2, kind: input, shape index: {}]
  %s3 = inlined_call_operand.hbm [shape: f32[11,128], index: 3, kind: input, shape index: {}]
  %s4 = inlined_call_operand.vmem [shape: f32[2,160], index: 4, kind: output, shape index: {0}]
  %s5 = inlined_call_operand.vmem [shape: f32[2,160], index: 5, kind: output, shape index: {1}]
  %s6 = inlined_call_operand.hbm [shape: f32[2,5], index: 6, kind: output, shape index: {2}]
  %7 = xla_tuple %s4, %s5, %s6
  %s8 = sld [smem:[#allocation0]]
  $region54: #{subgoal_decomposer.1} parent=0
    _
  %s10 = ssub.s32 1, %s8
  %s11 = scalar_select 0, %s10, %s8
  $region1: #{subgoal_decomposer.1} parent=0
    #allocation2 [shape = 'u8[1024]{0}', space=vmem, size = 0x400, scoped, tag = 'input window, operand 0, single buffered']
    #allocation3 [shape = 's32[1]{0}', space=sflag, size = 0x4, scoped, tag = 'scoped memory for subgoal_decomposer.1']
    #allocation4 [shape = 's32[1]{0}', space=sflag, size = 0x4, scoped, tag = 'scoped memory for subgoal_decomposer.1']
    #allocation5 [shape = 'u8[49152]{0}', space=vmem, size = 0xc000, scoped, tag = 'input window, operand 2, single buffered']
    #allocation6 [shape = 's32[1]{0}', space=sflag, size = 0x4, scoped, tag = 'scoped memory for subgoal_decomposer.1']
    #allocation7 [shape = 'u8[8192]{0}', space=vmem, size = 0x2000, scoped, tag = 'input window, operand 3, single buffered']
    #allocation8 [shape = 'u8[1024]{0}', space=vmem, size = 0x400, scoped, tag = 'output window, operand 2, single buffered']
    %12 = vsyncpa [#allocation3], 0
    %13 = vsyncpa [#allocation6], 0
    %14 = vsyncpa [#allocation4], 0
    // Predicated region
    $region2: #{subgoal_decomposer.1} parent=1 // pred_check
      _
    $region3: #{subgoal_decomposer.1} parent=1 // pred_check_branch
      %16 = sbr.rel (0) target = $region5
    $region4: #{subgoal_decomposer.1} parent=1 // pred_region
      %s18 = ssub.s32 32, 32
      %19 = vsyncadd [#allocation3], %s18
      %s21 = sshll.u32 [#allocation2], 4
      %s22 = int_to_ptr.vmem [resolvable:$true] %s21
      %24 = dma.hbm_to_vmem [thread:$0]  %s0, 32, %s22, [#allocation3]
    $region5: #{subgoal_decomposer.1} parent=1 // pred_fallthru
      _
    // Predicated region
    $region6: #{subgoal_decomposer.1} parent=1 // pred_check
      _
    $region7: #{subgoal_decomposer.1} parent=1 // pred_check_branch
      %26 = sbr.rel (0) target = $region9
    $region8: #{subgoal_decomposer.1} parent=1 // pred_region
      _
    $region9: #{subgoal_decomposer.1} parent=1 // pred_fallthru
      _
    // Predicated region
    $region10: #{subgoal_decomposer.1} parent=1 // pred_check
      _
    $region11: #{subgoal_decomposer.1} parent=1 // pred_check_branch
      %28 = sbr.rel (0) target = $region13
    $region12: #{subgoal_decomposer.1} parent=1 // pred_region
      %s30 = ssub.s32 1536, 1536
      %31 = vsyncadd [#allocation6], %s30
      %s32 = sshll.u32 [#allocation5], 4
      %s33 = int_to_ptr.vmem [resolvable:$true] %s32
      %38 = dma.hbm_to_vmem [thread:$0]  %s2, 1536, %s33, [#allocation6], 384, 384, 24
    $region13: #{subgoal_decomposer.1} parent=1 // pred_fallthru
      _
    // Predicated region
    $region14: #{subgoal_decomposer.1} parent=1 // pred_check
      _
    $region15: #{subgoal_decomposer.1} parent=1 // pred_check_branch
      %40 = sbr.rel (0) target = $region17
    $region16: #{subgoal_decomposer.1} parent=1 // pred_region
      %s42 = ssub.s32 256, 256
      %43 = vsyncadd [#allocation6], %s42
      %s44 = sshll.u32 [#allocation7], 4
      %s45 = int_to_ptr.vmem [resolvable:$true] %s44
      %50 = dma.hbm_to_vmem [thread:$0]  %s3, 256, %s45, [#allocation6], 128, 128, 8
    $region17: #{subgoal_decomposer.1} parent=1 // pred_fallthru
      _
    // Predicated region
    $region18: #{subgoal_decomposer.1} parent=1 // pred_check
      _
    $region19: #{subgoal_decomposer.1} parent=1 // pred_check_branch
      %52 = sbr.rel (0) target = $region21
    $region20: #{subgoal_decomposer.1} parent=1 // pred_region
      %53 = dma.done [#allocation3], 32
    $region21: #{subgoal_decomposer.1} parent=1 // pred_fallthru
      _
    // Predicated region
    $region22: #{subgoal_decomposer.1} parent=1 // pred_check
      _
    $region23: #{subgoal_decomposer.1} parent=1 // pred_check_branch
      %55 = sbr.rel (0) target = $region25
    $region24: #{subgoal_decomposer.1} parent=1 // pred_region
      %56 = dma.done [#allocation6], 1536
    $region25: #{subgoal_decomposer.1} parent=1 // pred_fallthru
      _
    // Predicated region
    $region26: #{subgoal_decomposer.1} parent=1 // pred_check
      _
    $region27: #{subgoal_decomposer.1} parent=1 // pred_check_branch
      %58 = sbr.rel (0) target = $region29
    $region28: #{subgoal_decomposer.1} parent=1 // pred_region
      %59 = dma.done [#allocation6], 256
    $region29: #{subgoal_decomposer.1} parent=1 // pred_fallthru
      _
    %v60 = vld [vmem:[#allocation2] sm:$0x3]
    %v61 = vld [vmem:[%s1] sm:$0x3]
    %v62 = vld [vmem:[#allocation5] sm:$0xff]
    %v63 = vld [vmem:[#allocation5 + $0x8] sm:$0xff]
    %v64 = vld [vmem:[#allocation5 + $0x10] sm:$0xff]
    %v65 = vld [vmem:[#allocation5 + $0x18] sm:$0xff]
    %v66 = vld [vmem:[#allocation5 + $0x20] sm:$0xff]
    %v67 = vld [vmem:[#allocation5 + $0x28] sm:$0xff]
    %v68 = vld [vmem:[#allocation5 + $0x30] sm:$0xff]
    %v69 = vld [vmem:[#allocation5 + $0x38] sm:$0xff]
    %v70 = vld [vmem:[#allocation5 + $0x40] sm:$0xff]
    %v71 = vld [vmem:[#allocation5 + $0x48] sm:$0xff]
    %v72 = vld [vmem:[#allocation5 + $0x50] sm:$0xff]
    %v73 = vld [vmem:[#allocation5 + $0x58] sm:$0xff]
    %v74 = vld [vmem:[#allocation7] sm:$0xff]
    %v75 = vld [vmem:[#allocation7 + $0x8] sm:$0x7]
    %v76 = vlaneseq
    %v77 = vshrl.u32 %v76, 7
    %v78 = vsub.s32 0, %v77
    %v79 = vrot.slane %v74, %v78
    %v80 = vlaneseq
    %v81 = vshrl.u32 %v80, 7
    %v82 = vsub.s32 5, %v81
    %v83 = vrot.slane %v74, %v82
    %v84 = vlaneseq
    %v85 = vshrl.u32 %v84, 7
    %v86 = vsub.s32 6, %v85
    %v87 = vrot.slane %v74, %v86
    %v88 = vlaneseq
    %v89 = vshrl.u32 %v88, 7
    %v90 = vsub.s32 7, %v89
    %v91 = vrot.slane %v74, %v90
    %v92 = vlaneseq
    %v93 = vshrl.u32 %v92, 7
    %v94 = vsub.s32 0, %v93
    %v95 = vrot.slane %v75, %v94
    %v96 = vlaneseq
    %v97 = vshrl.u32 %v96, 7
    %v98 = vsub.s32 1, %v97
    %v99 = vrot.slane %v75, %v98
    %v100 = vlaneseq
    %v101 = vshrl.u32 %v100, 7
    %v102 = vsub.s32 2, %v101
    %v103 = vrot.slane %v75, %v102
    %v104 = vlaneseq
    %v105 = vshrl.u32 %v104, 7
    %v106 = vsub.s32 2, %v105
    %v107 = vrot.slane %v74, %v106
    %112 = vrot.lane.b32.xlu0 %v63, 32
    %v113 = vpop.permute.xlu0 %112
    %114 = vrot.lane.b32.xlu0 %v66, 32
    %v115 = vpop.permute.xlu0 %114
    %116 = vrot.lane.b32.xlu0 %v69, 32
    %v117 = vpop.permute.xlu0 %116
    %118 = vrot.lane.b32.xlu0 %v72, 32
    %v119 = vpop.permute.xlu0 %118
    %vm124 = vcmask 261120
    %v126 = vsel %vm124, %v60, 0
    %128 = vmatprep.subr.mxu0 0.0
    %129 = vmatpush1.msra.mxu0 %v113
    %130 = vmatprep.subr.mxu0 0.0
    %131 = vmatpush1.msra.mxu0 %v115
    %132 = vmatprep.subr.mxu0 0.0
    %133 = vmatpush1.msra.mxu0 %v117
    %134 = vmatprep.subr.mxu0 0.0
    %135 = vmatpush1.msra.mxu0 %v119
    %136 = vmatprep.subr.mxu0 0.0
    %137 = vmatpush1.msra.mxu0 0.0
    %138 = vmatprep.subr.mxu0 0.0
    %139 = vmatpush1.msra.mxu0 0.0
    %140 = vmatprep.subr.mxu0 0.0
    %141 = vmatpush1.msra.mxu0 0.0
    %142 = vmatprep.subr.mxu0 0.0
    %143 = vmatpush1.msra.mxu0 0.0
    %144 = vmatprep.subr.mxu0 0.0
    %145 = vmatpush1.msra.mxu0 0.0
    %146 = vmatprep.subr.mxu0 0.0
    %147 = vmatpush1.msra.mxu0 0.0
    %148 = vmatprep.subr.mxu0 0.0
    %149 = vmatpush1.msra.mxu0 0.0
    %150 = vmatprep.subr.mxu0 0.0
    %151 = vmatpush1.msra.mxu0 0.0
    %152 = vmatprep.subr.mxu0 0.0
    %153 = vmatpush1.msra.mxu0 0.0
    %154 = vmatprep.subr.mxu0 0.0
    %155 = vmatpush1.msra.mxu0 0.0
    %156 = vmatprep.subr.mxu0 0.0
    %157 = vmatpush1.msra.mxu0 0.0
    %158 = vmatprep.subr.mxu0 0.0
    %159 = vmatpush1.msra.mxu0 0.0
    %160 = vmatprep.subr.mxu0 0.0
    %161 = vmatpush1.msra.mxu0 0.0
    %162 = vmatprep.subr.mxu0 0.0
    %163 = vmatpush1.msra.mxu0 0.0
    %164 = vmatprep.subr.mxu0 0.0
    %165 = vmatpush1.msra.mxu0 0.0
    %166 = vmatprep.subr.mxu0 0.0
    %167 = vmatpush1.msra.mxu0 0.0
    %168 = vmatprep.subr.mxu0 0.0
    %169 = vmatpush1.msra.mxu0 0.0
    %170 = vmatprep.subr.mxu0 0.0
    %171 = vmatpush1.msra.mxu0 0.0
    %172 = vmatprep.subr.mxu0 0.0
    %173 = vmatpush1.msra.mxu0 0.0
    %174 = vmatprep.subr.mxu0 0.0
    %175 = vmatpush1.msra.mxu0 0.0
    %176 = vmatprep.subr.mxu0 0.0
    %177 = vmatpush1.msra.mxu0 0.0
    %178 = vmatprep.subr.mxu0 0.0
    %179 = vmatpush1.msra.mxu0 0.0
    %180 = vmatprep.subr.mxu0 0.0
    %181 = vmatpush1.msra.mxu0 0.0
    %182 = vmatprep.subr.mxu0 0.0
    %183 = vmatpush1.msra.mxu0 0.0
    %184 = vmatprep.subr.mxu0 0.0
    %185 = vmatpush1.msra.mxu0 0.0
    %186 = vmatprep.subr.mxu0 0.0
    %187 = vmatpush1.msra.mxu0 0.0
    %188 = vmatprep.subr.mxu0 0.0
    %189 = vmatpush1.msra.mxu0 0.0
    %190 = vmatprep.subr.mxu0 0.0
    %191 = vmatpush1.msra.mxu0 0.0
    %192 = vmatprep.mubr.f32.mxu0 0.0
    %193 = vmatmul.mubr.f32.gmra.mrb[0].mxu0 %v126
    %v194 = vpop.f32.mrb[0].mxu0
    %v195 = vadd.f32 %v107, %v194
    %v196 = vpop.f32.mrb[0].mxu0
    %197 = vdwg.mxu0
    %vm198 = vcmask 254976
    %v199 = vsel %vm198, %v195, 0.0
    %200 = vadd.xlane.f32.xlu0 %v199
    %v201 = vpop.xlane.xlu0 %200
    %v202 = vrcp.pop 32.0
    %v203 = vmul.f32 %v201, %v202
    %v204 = vmul.f32 %v195, %v195
    %v205 = vsel %vm198, %v204, 0.0
    %206 = vadd.xlane.f32.xlu0 %v205
    %v207 = vpop.xlane.xlu0 %206
    %v208 = vmul.f32 %v207, %v202
    %v209 = vmul.f32 %v203, %v203
    %v210 = vsub.f32 %v208, %v209
    %v211 = vsub.f32 %v195, %v203
    %v212 = vadd.f32 %v210, 1e-05
    %v213 = vrsqrt.pop %v212
    %v214 = vmul.f32 %v211, %v213
    %v215 = vlaneseq
    %v216 = vshrl.u32 %v215, 7
    %v217 = vsub.s32 3, %v216
    %v218 = vrot.slane %v74, %v217
    %v219 = vmul.f32 %v214, %v218
    %v220 = vlaneseq
    %v221 = vshrl.u32 %v220, 7
    %v222 = vsub.s32 4, %v221
    %v223 = vrot.slane %v74, %v222
    %v224 = vadd.f32 %v219, %v223
    %v225 = vmax.f32 %v224, 0.0
    %v226 = vlaneseq
    %v227 = vshrl.u32 %v226, 7
    %v228 = vsub.s32 1, %v227
    %v229 = vrot.slane %v74, %v228
    %v231 = vsel %vm124, %v225, 0
    %233 = vmatprep.subr.mxu0 0.0
    %234 = vmatpush1.msra.mxu0 %v63
    %235 = vmatprep.subr.mxu0 0.0
    %236 = vmatpush1.msra.mxu0 %v66
    %237 = vmatprep.subr.mxu0 0.0
    %238 = vmatpush1.msra.mxu0 %v69
    %239 = vmatprep.subr.mxu0 0.0
    %240 = vmatpush1.msra.mxu0 %v72
    %241 = vmatprep.subr.mxu0 0.0
    %242 = vmatpush1.msra.mxu0 0.0
    %243 = vmatprep.subr.mxu0 0.0
    %244 = vmatpush1.msra.mxu0 0.0
    %245 = vmatprep.subr.mxu0 0.0
    %246 = vmatpush1.msra.mxu0 0.0
    %247 = vmatprep.subr.mxu0 0.0
    %248 = vmatpush1.msra.mxu0 0.0
    %249 = vmatprep.subr.mxu0 0.0
    %250 = vmatpush1.msra.mxu0 0.0
    %251 = vmatprep.subr.mxu0 0.0
    %252 = vmatpush1.msra.mxu0 0.0
    %253 = vmatprep.subr.mxu0 0.0
    %254 = vmatpush1.msra.mxu0 0.0
    %255 = vmatprep.subr.mxu0 0.0
    %256 = vmatpush1.msra.mxu0 0.0
    %257 = vmatprep.subr.mxu0 0.0
    %258 = vmatpush1.msra.mxu0 0.0
    %259 = vmatprep.subr.mxu0 0.0
    %260 = vmatpush1.msra.mxu0 0.0
    %261 = vmatprep.subr.mxu0 0.0
    %262 = vmatpush1.msra.mxu0 0.0
    %263 = vmatprep.subr.mxu0 0.0
    %264 = vmatpush1.msra.mxu0 0.0
    %265 = vmatprep.subr.mxu0 0.0
    %266 = vmatpush1.msra.mxu0 0.0
    %267 = vmatprep.subr.mxu0 0.0
    %268 = vmatpush1.msra.mxu0 0.0
    %269 = vmatprep.subr.mxu0 0.0
    %270 = vmatpush1.msra.mxu0 0.0
    %271 = vmatprep.subr.mxu0 0.0
    %272 = vmatpush1.msra.mxu0 0.0
    %273 = vmatprep.subr.mxu0 0.0
    %274 = vmatpush1.msra.mxu0 0.0
    %275 = vmatprep.subr.mxu0 0.0
    %276 = vmatpush1.msra.mxu0 0.0
    %277 = vmatprep.subr.mxu0 0.0
    %278 = vmatpush1.msra.mxu0 0.0
    %279 = vmatprep.subr.mxu0 0.0
    %280 = vmatpush1.msra.mxu0 0.0
    %281 = vmatprep.subr.mxu0 0.0
    %282 = vmatpush1.msra.mxu0 0.0
    %283 = vmatprep.subr.mxu0 0.0
    %284 = vmatpush1.msra.mxu0 0.0
    %285 = vmatprep.subr.mxu0 0.0
    %286 = vmatpush1.msra.mxu0 0.0
    %287 = vmatprep.subr.mxu0 0.0
    %288 = vmatpush1.msra.mxu0 0.0
    %289 = vmatprep.subr.mxu0 0.0
    %290 = vmatpush1.msra.mxu0 0.0
    %291 = vmatprep.subr.mxu0 0.0
    %292 = vmatpush1.msra.mxu0 0.0
    %293 = vmatprep.subr.mxu0 0.0
    %294 = vmatpush1.msra.mxu0 0.0
    %295 = vmatprep.subr.mxu0 0.0
    %296 = vmatpush1.msra.mxu0 0.0
    %297 = vmatprep.mubr.f32.mxu0 0.0
    %298 = vmatmul.mubr.f32.gmra.mrb[0].mxu0 %v231
    %v299 = vpop.f32.mrb[0].mxu0
    %v300 = vadd.f32 %v229, %v299
    %v301 = vpop.f32.mrb[0].mxu0
    %302 = vdwg.mxu0
    %v304 = vsel %vm124, %v61, 0
    %306 = vmatprep.subr.mxu0 0.0
    %307 = vmatpush1.msra.mxu0 %v62
    %308 = vmatprep.subr.mxu0 0.0
    %309 = vmatpush1.msra.mxu0 %v65
    %310 = vmatprep.subr.mxu0 0.0
    %311 = vmatpush1.msra.mxu0 %v68
    %312 = vmatprep.subr.mxu0 0.0
    %313 = vmatpush1.msra.mxu0 %v71
    %314 = vmatprep.subr.mxu0 0.0
    %315 = vmatpush1.msra.mxu0 0.0
    %316 = vmatprep.subr.mxu0 0.0
    %317 = vmatpush1.msra.mxu0 0.0
    %318 = vmatprep.subr.mxu0 0.0
    %319 = vmatpush1.msra.mxu0 0.0
    %320 = vmatprep.subr.mxu0 0.0
    %321 = vmatpush1.msra.mxu0 0.0
    %322 = vmatprep.subr.mxu0 0.0
    %323 = vmatpush1.msra.mxu0 0.0
    %324 = vmatprep.subr.mxu0 0.0
    %325 = vmatpush1.msra.mxu0 0.0
    %326 = vmatprep.subr.mxu0 0.0
    %327 = vmatpush1.msra.mxu0 0.0
    %328 = vmatprep.subr.mxu0 0.0
    %329 = vmatpush1.msra.mxu0 0.0
    %330 = vmatprep.subr.mxu0 0.0
    %331 = vmatpush1.msra.mxu0 0.0
    %332 = vmatprep.subr.mxu0 0.0
    %333 = vmatpush1.msra.mxu0 0.0
    %334 = vmatprep.subr.mxu0 0.0
    %335 = vmatpush1.msra.mxu0 0.0
    %336 = vmatprep.subr.mxu0 0.0
    %337 = vmatpush1.msra.mxu0 0.0
    %338 = vmatprep.subr.mxu0 0.0
    %339 = vmatpush1.msra.mxu0 0.0
    %340 = vmatprep.subr.mxu0 0.0
    %341 = vmatpush1.msra.mxu0 0.0
    %342 = vmatprep.subr.mxu0 0.0
    %343 = vmatpush1.msra.mxu0 0.0
    %344 = vmatprep.subr.mxu0 0.0
    %345 = vmatpush1.msra.mxu0 0.0
    %346 = vmatprep.subr.mxu0 0.0
    %347 = vmatpush1.msra.mxu0 0.0
    %348 = vmatprep.subr.mxu0 0.0
    %349 = vmatpush1.msra.mxu0 0.0
    %350 = vmatprep.subr.mxu0 0.0
    %351 = vmatpush1.msra.mxu0 0.0
    %352 = vmatprep.subr.mxu0 0.0
    %353 = vmatpush1.msra.mxu0 0.0
    %354 = vmatprep.subr.mxu0 0.0
    %355 = vmatpush1.msra.mxu0 0.0
    %356 = vmatprep.subr.mxu0 0.0
    %357 = vmatpush1.msra.mxu0 0.0
    %358 = vmatprep.subr.mxu0 0.0
    %359 = vmatpush1.msra.mxu0 0.0
    %360 = vmatprep.subr.mxu0 0.0
    %361 = vmatpush1.msra.mxu0 0.0
    %362 = vmatprep.subr.mxu0 0.0
    %363 = vmatpush1.msra.mxu0 0.0
    %364 = vmatprep.subr.mxu0 0.0
    %365 = vmatpush1.msra.mxu0 0.0
    %366 = vmatprep.subr.mxu0 0.0
    %367 = vmatpush1.msra.mxu0 0.0
    %368 = vmatprep.subr.mxu0 0.0
    %369 = vmatpush1.msra.mxu0 0.0
    %370 = vmatprep.mubr.f32.mxu0 0.0
    %371 = vmatmul.mubr.f32.gmra.mrb[0].mxu0 %v304
    %v372 = vpop.f32.mrb[0].mxu0
    %v373 = vadd.f32 %v79, %v372
    %v374 = vpop.f32.mrb[0].mxu0
    %375 = vdwg.mxu0
    %v376 = vadd.f32 %v300, %v373
    %v377 = vxor.u32 %v376, 2147483648
    %v378 = vmul.f32 %v377, 1.442695
    %v379 = vpow.pop %v378
    %v380 = vadd.f32 %v379, 1.0
    %v381 = vrcp.pop %v380
    %v382 = vmul.f32 1.0, %v381
    %384 = vrot.lane.b32.xlu0 %v373, 64
    %v385 = vpop.permute.xlu0 %384
    %v387 = vmul.f32 %v382, %v385
    %389 = vrot.lane.b32.xlu0 %v387, 64
    %v390 = vpop.permute.xlu0 %389
    %v392 = vadd.f32 %v300, %v390
    %v393 = vtanh.pop %v392
    %v394 = vsub.f32 1.0, %v382
    %396 = vrot.lane.b32.xlu0 %v393, 96
    %v397 = vpop.permute.xlu0 %396
    %v399 = vmul.f32 %v394, %v397
    %400 = vrot.lane.b32.xlu0 %v61, 32
    %v401 = vpop.permute.xlu0 %400
    %v403 = vmul.f32 %v382, %v401
    %v404 = vadd.f32 %v399, %v403
    %406 = vrot.lane.b32.xlu0 %v404, 96
    %v407 = vpop.permute.xlu0 %406
    %v408 = vsel %vm124, %v407, 0
    %410 = vmatprep.subr.mxu0 0.0
    %411 = vmatpush1.msra.mxu0 %v62
    %412 = vmatprep.subr.mxu0 0.0
    %413 = vmatpush1.msra.mxu0 %v65
    %414 = vmatprep.subr.mxu0 0.0
    %415 = vmatpush1.msra.mxu0 %v68
    %416 = vmatprep.subr.mxu0 0.0
    %417 = vmatpush1.msra.mxu0 %v71
    %418 = vmatprep.subr.mxu0 0.0
    %419 = vmatpush1.msra.mxu0 0.0
    %420 = vmatprep.subr.mxu0 0.0
    %421 = vmatpush1.msra.mxu0 0.0
    %422 = vmatprep.subr.mxu0 0.0
    %423 = vmatpush1.msra.mxu0 0.0
    %424 = vmatprep.subr.mxu0 0.0
    %425 = vmatpush1.msra.mxu0 0.0
    %426 = vmatprep.subr.mxu0 0.0
    %427 = vmatpush1.msra.mxu0 0.0
    %428 = vmatprep.subr.mxu0 0.0
    %429 = vmatpush1.msra.mxu0 0.0
    %430 = vmatprep.subr.mxu0 0.0
    %431 = vmatpush1.msra.mxu0 0.0
    %432 = vmatprep.subr.mxu0 0.0
    %433 = vmatpush1.msra.mxu0 0.0
    %434 = vmatprep.subr.mxu0 0.0
    %435 = vmatpush1.msra.mxu0 0.0
    %436 = vmatprep.subr.mxu0 0.0
    %437 = vmatpush1.msra.mxu0 0.0
    %438 = vmatprep.subr.mxu0 0.0
    %439 = vmatpush1.msra.mxu0 0.0
    %440 = vmatprep.subr.mxu0 0.0
    %441 = vmatpush1.msra.mxu0 0.0
    %442 = vmatprep.subr.mxu0 0.0
    %443 = vmatpush1.msra.mxu0 0.0
    %444 = vmatprep.subr.mxu0 0.0
    %445 = vmatpush1.msra.mxu0 0.0
    %446 = vmatprep.subr.mxu0 0.0
    %447 = vmatpush1.msra.mxu0 0.0
    %448 = vmatprep.subr.mxu0 0.0
    %449 = vmatpush1.msra.mxu0 0.0
    %450 = vmatprep.subr.mxu0 0.0
    %451 = vmatpush1.msra.mxu0 0.0
    %452 = vmatprep.subr.mxu0 0.0
    %453 = vmatpush1.msra.mxu0 0.0
    %454 = vmatprep.subr.mxu0 0.0
    %455 = vmatpush1.msra.mxu0 0.0
    %456 = vmatprep.subr.mxu0 0.0
    %457 = vmatpush1.msra.mxu0 0.0
    %458 = vmatprep.subr.mxu0 0.0
    %459 = vmatpush1.msra.mxu0 0.0
    %460 = vmatprep.subr.mxu0 0.0
    %461 = vmatpush1.msra.mxu0 0.0
    %462 = vmatprep.subr.mxu0 0.0
    %463 = vmatpush1.msra.mxu0 0.0
    %464 = vmatprep.subr.mxu0 0.0
    %465 = vmatpush1.msra.mxu0 0.0
    %466 = vmatprep.subr.mxu0 0.0
    %467 = vmatpush1.msra.mxu0 0.0
    %468 = vmatprep.subr.mxu0 0.0
    %469 = vmatpush1.msra.mxu0 0.0
    %470 = vmatprep.subr.mxu0 0.0
    %471 = vmatpush1.msra.mxu0 0.0
    %472 = vmatprep.subr.mxu0 0.0
    %473 = vmatpush1.msra.mxu0 0.0
    %474 = vmatprep.mubr.f32.mxu0 0.0
    %475 = vmatmul.mubr.f32.gmra.mrb[0].mxu0 %v408
    %v476 = vpop.f32.mrb[0].mxu0
    %v477 = vadd.f32 %v79, %v476
    %v478 = vpop.f32.mrb[0].mxu0
    %479 = vdwg.mxu0
    %484 = vrot.lane.b32.xlu0 %v64, 96
    %v485 = vpop.permute.xlu0 %484
    %486 = vrot.lane.b32.xlu0 %v67, 96
    %v487 = vpop.permute.xlu0 %486
    %488 = vrot.lane.b32.xlu0 %v70, 96
    %v489 = vpop.permute.xlu0 %488
    %490 = vrot.lane.b32.xlu0 %v73, 96
    %v491 = vpop.permute.xlu0 %490
    %496 = vmatprep.subr.mxu0 0.0
    %497 = vmatpush1.msra.mxu0 %v485
    %498 = vmatprep.subr.mxu0 0.0
    %499 = vmatpush1.msra.mxu0 %v487
    %500 = vmatprep.subr.mxu0 0.0
    %501 = vmatpush1.msra.mxu0 %v489
    %502 = vmatprep.subr.mxu0 0.0
    %503 = vmatpush1.msra.mxu0 %v491
    %504 = vmatprep.subr.mxu0 0.0
    %505 = vmatpush1.msra.mxu0 0.0
    %506 = vmatprep.subr.mxu0 0.0
    %507 = vmatpush1.msra.mxu0 0.0
    %508 = vmatprep.subr.mxu0 0.0
    %509 = vmatpush1.msra.mxu0 0.0
    %510 = vmatprep.subr.mxu0 0.0
    %511 = vmatpush1.msra.mxu0 0.0
    %512 = vmatprep.subr.mxu0 0.0
    %513 = vmatpush1.msra.mxu0 0.0
    %514 = vmatprep.subr.mxu0 0.0
    %515 = vmatpush1.msra.mxu0 0.0
    %516 = vmatprep.subr.mxu0 0.0
    %517 = vmatpush1.msra.mxu0 0.0
    %518 = vmatprep.subr.mxu0 0.0
    %519 = vmatpush1.msra.mxu0 0.0
    %520 = vmatprep.subr.mxu0 0.0
    %521 = vmatpush1.msra.mxu0 0.0
    %522 = vmatprep.subr.mxu0 0.0
    %523 = vmatpush1.msra.mxu0 0.0
    %524 = vmatprep.subr.mxu0 0.0
    %525 = vmatpush1.msra.mxu0 0.0
    %526 = vmatprep.subr.mxu0 0.0
    %527 = vmatpush1.msra.mxu0 0.0
    %528 = vmatprep.subr.mxu0 0.0
    %529 = vmatpush1.msra.mxu0 0.0
    %530 = vmatprep.subr.mxu0 0.0
    %531 = vmatpush1.msra.mxu0 0.0
    %532 = vmatprep.subr.mxu0 0.0
    %533 = vmatpush1.msra.mxu0 0.0
    %534 = vmatprep.subr.mxu0 0.0
    %535 = vmatpush1.msra.mxu0 0.0
    %536 = vmatprep.subr.mxu0 0.0
    %537 = vmatpush1.msra.mxu0 0.0
    %538 = vmatprep.subr.mxu0 0.0
    %539 = vmatpush1.msra.mxu0 0.0
    %540 = vmatprep.subr.mxu0 0.0
    %541 = vmatpush1.msra.mxu0 0.0
    %542 = vmatprep.subr.mxu0 0.0
    %543 = vmatpush1.msra.mxu0 0.0
    %544 = vmatprep.subr.mxu0 0.0
    %545 = vmatpush1.msra.mxu0 0.0
    %546 = vmatprep.subr.mxu0 0.0
    %547 = vmatpush1.msra.mxu0 0.0
    %548 = vmatprep.subr.mxu0 0.0
    %549 = vmatpush1.msra.mxu0 0.0
    %550 = vmatprep.subr.mxu0 0.0
    %551 = vmatpush1.msra.mxu0 0.0
    %552 = vmatprep.subr.mxu0 0.0
    %553 = vmatpush1.msra.mxu0 0.0
    %554 = vmatprep.subr.mxu0 0.0
    %555 = vmatpush1.msra.mxu0 0.0
    %556 = vmatprep.subr.mxu0 0.0
    %557 = vmatpush1.msra.mxu0 0.0
    %558 = vmatprep.subr.mxu0 0.0
    %559 = vmatpush1.msra.mxu0 0.0
    %560 = vmatprep.mubr.f32.mxu0 0.0
    %561 = vmatmul.mubr.f32.gmra.mrb[0].mxu0 %v408
    %v562 = vpop.f32.mrb[0].mxu0
    %v563 = vadd.f32 %v95, %v562
    %v564 = vpop.f32.mrb[0].mxu0
    %565 = vdwg.mxu0
    %v566 = vmax.f32 %v563, 0.0
    %v567 = vmul.f32 %v566, %v99
    %vm568 = vcmask 123904
    %v569 = vsel %vm568, %v567, 0.0
    %570 = vadd.xlane.f32.xlu0 %v569
    %v571 = vpop.xlane.xlu0 %570
    %v572 = vadd.f32 %v571, %v103
    %v573 = vxor.u32 %v572, 2147483648
    %v574 = vmul.f32 %v573, 1.442695
    %v575 = vpow.pop %v574
    %v576 = vadd.f32 %v575, 1.0
    %v577 = vrcp.pop %v576
    %v578 = vmul.f32 1.0, %v577
    %580 = vrot.lane.b32.xlu0 %v477, 32
    %v581 = vpop.permute.xlu0 %580
    %v583 = vsel %vm198, %v581, 0.0
    %584 = vadd.xlane.f32.xlu0 %v583
    %v585 = vpop.xlane.xlu0 %584
    %v586 = vmul.f32 %v585, %v202
    %v587 = vmul.f32 %v477, %v477
    %589 = vrot.lane.b32.xlu0 %v587, 32
    %v590 = vpop.permute.xlu0 %589
    %v592 = vsel %vm198, %v590, 0.0
    %593 = vadd.xlane.f32.xlu0 %v592
    %v594 = vpop.xlane.xlu0 %593
    %v595 = vmul.f32 %v594, %v202
    %v596 = vmul.f32 %v586, %v586
    %v597 = vsub.f32 %v595, %v596
    %v598 = vsub.f32 %v477, %v586
    %v599 = vadd.f32 %v597, 1e-05
    %v600 = vrsqrt.pop %v599
    %v601 = vmul.f32 %v598, %v600
    %603 = vrot.lane.b32.xlu0 %v83, 96
    %v604 = vpop.permute.xlu0 %603
    %v606 = vmul.f32 %v601, %v604
    %608 = vrot.lane.b32.xlu0 %v87, 96
    %v609 = vpop.permute.xlu0 %608
    %v611 = vadd.f32 %v606, %v609
    %v612 = vmax.f32 %v611, 0.0
    %614 = vrot.lane.b32.xlu0 %v612, 32
    %v615 = vpop.permute.xlu0 %614
    %v616 = vsel %vm124, %v615, 0
    %618 = vmatprep.subr.mxu0 0.0
    %619 = vmatpush1.msra.mxu0 %v64
    %620 = vmatprep.subr.mxu0 0.0
    %621 = vmatpush1.msra.mxu0 %v67
    %622 = vmatprep.subr.mxu0 0.0
    %623 = vmatpush1.msra.mxu0 %v70
    %624 = vmatprep.subr.mxu0 0.0
    %625 = vmatpush1.msra.mxu0 %v73
    %626 = vmatprep.subr.mxu0 0.0
    %627 = vmatpush1.msra.mxu0 0.0
    %628 = vmatprep.subr.mxu0 0.0
    %629 = vmatpush1.msra.mxu0 0.0
    %630 = vmatprep.subr.mxu0 0.0
    %631 = vmatpush1.msra.mxu0 0.0
    %632 = vmatprep.subr.mxu0 0.0
    %633 = vmatpush1.msra.mxu0 0.0
    %634 = vmatprep.subr.mxu0 0.0
    %635 = vmatpush1.msra.mxu0 0.0
    %636 = vmatprep.subr.mxu0 0.0
    %637 = vmatpush1.msra.mxu0 0.0
    %638 = vmatprep.subr.mxu0 0.0
    %639 = vmatpush1.msra.mxu0 0.0
    %640 = vmatprep.subr.mxu0 0.0
    %641 = vmatpush1.msra.mxu0 0.0
    %642 = vmatprep.subr.mxu0 0.0
    %643 = vmatpush1.msra.mxu0 0.0
    %644 = vmatprep.subr.mxu0 0.0
    %645 = vmatpush1.msra.mxu0 0.0
    %646 = vmatprep.subr.mxu0 0.0
    %647 = vmatpush1.msra.mxu0 0.0
    %648 = vmatprep.subr.mxu0 0.0
    %649 = vmatpush1.msra.mxu0 0.0
    %650 = vmatprep.subr.mxu0 0.0
    %651 = vmatpush1.msra.mxu0 0.0
    %652 = vmatprep.subr.mxu0 0.0
    %653 = vmatpush1.msra.mxu0 0.0
    %654 = vmatprep.subr.mxu0 0.0
    %655 = vmatpush1.msra.mxu0 0.0
    %656 = vmatprep.subr.mxu0 0.0
    %657 = vmatpush1.msra.mxu0 0.0
    %658 = vmatprep.subr.mxu0 0.0
    %659 = vmatpush1.msra.mxu0 0.0
    %660 = vmatprep.subr.mxu0 0.0
    %661 = vmatpush1.msra.mxu0 0.0
    %662 = vmatprep.subr.mxu0 0.0
    %663 = vmatpush1.msra.mxu0 0.0
    %664 = vmatprep.subr.mxu0 0.0
    %665 = vmatpush1.msra.mxu0 0.0
    %666 = vmatprep.subr.mxu0 0.0
    %667 = vmatpush1.msra.mxu0 0.0
    %668 = vmatprep.subr.mxu0 0.0
    %669 = vmatpush1.msra.mxu0 0.0
    %670 = vmatprep.subr.mxu0 0.0
    %671 = vmatpush1.msra.mxu0 0.0
    %672 = vmatprep.subr.mxu0 0.0
    %673 = vmatpush1.msra.mxu0 0.0
    %674 = vmatprep.subr.mxu0 0.0
    %675 = vmatpush1.msra.mxu0 0.0
    %676 = vmatprep.subr.mxu0 0.0
    %677 = vmatpush1.msra.mxu0 0.0
    %678 = vmatprep.subr.mxu0 0.0
    %679 = vmatpush1.msra.mxu0 0.0
    %680 = vmatprep.subr.mxu0 0.0
    %681 = vmatpush1.msra.mxu0 0.0
    %682 = vmatprep.mubr.f32.mxu0 0.0
    %683 = vmatmul.mubr.f32.gmra.mrb[0].mxu0 %v616
    %v684 = vpop.f32.mrb[0].mxu0
    %v685 = vadd.f32 %v91, %v684
    %v686 = vpop.f32.mrb[0].mxu0
    %687 = vdwg.mxu0
    %v688 = vadd.f32 %v300, %v477
    %v689 = vxor.u32 %v688, 2147483648
    %v690 = vmul.f32 %v689, 1.442695
    %v691 = vpow.pop %v690
    %v692 = vadd.f32 %v691, 1.0
    %v693 = vrcp.pop %v692
    %v694 = vmul.f32 1.0, %v693
    %695 = vrot.lane.b32.xlu0 %v477, 64
    %v696 = vpop.permute.xlu0 %695
    %v698 = vmul.f32 %v694, %v696
    %700 = vrot.lane.b32.xlu0 %v698, 64
    %v701 = vpop.permute.xlu0 %700
    %v703 = vadd.f32 %v300, %v701
    %v704 = vtanh.pop %v703
    %v705 = vsub.f32 1.0, %v694
    %707 = vrot.lane.b32.xlu0 %v704, 96
    %v708 = vpop.permute.xlu0 %707
    %v710 = vmul.f32 %v705, %v708
    %v711 = vmul.f32 %v694, %v404
    %v712 = vadd.f32 %v710, %v711
    %714 = vrot.lane.b32.xlu0 %v712, 96
    %v715 = vpop.permute.xlu0 %714
    %v716 = vsel %vm124, %v715, 0
    %718 = vmatprep.subr.mxu0 0.0
    %719 = vmatpush1.msra.mxu0 %v62
    %720 = vmatprep.subr.mxu0 0.0
    %721 = vmatpush1.msra.mxu0 %v65
    %722 = vmatprep.subr.mxu0 0.0
    %723 = vmatpush1.msra.mxu0 %v68
    %724 = vmatprep.subr.mxu0 0.0
    %725 = vmatpush1.msra.mxu0 %v71
    %726 = vmatprep.subr.mxu0 0.0
    %727 = vmatpush1.msra.mxu0 0.0
    %728 = vmatprep.subr.mxu0 0.0
    %729 = vmatpush1.msra.mxu0 0.0
    %730 = vmatprep.subr.mxu0 0.0
    %731 = vmatpush1.msra.mxu0 0.0
    %732 = vmatprep.subr.mxu0 0.0
    %733 = vmatpush1.msra.mxu0 0.0
    %734 = vmatprep.subr.mxu0 0.0
    %735 = vmatpush1.msra.mxu0 0.0
    %736 = vmatprep.subr.mxu0 0.0
    %737 = vmatpush1.msra.mxu0 0.0
    %738 = vmatprep.subr.mxu0 0.0
    %739 = vmatpush1.msra.mxu0 0.0
    %740 = vmatprep.subr.mxu0 0.0
    %741 = vmatpush1.msra.mxu0 0.0
    %742 = vmatprep.subr.mxu0 0.0
    %743 = vmatpush1.msra.mxu0 0.0
    %744 = vmatprep.subr.mxu0 0.0
    %745 = vmatpush1.msra.mxu0 0.0
    %746 = vmatprep.subr.mxu0 0.0
    %747 = vmatpush1.msra.mxu0 0.0
    %748 = vmatprep.subr.mxu0 0.0
    %749 = vmatpush1.msra.mxu0 0.0
    %750 = vmatprep.subr.mxu0 0.0
    %751 = vmatpush1.msra.mxu0 0.0
    %752 = vmatprep.subr.mxu0 0.0
    %753 = vmatpush1.msra.mxu0 0.0
    %754 = vmatprep.subr.mxu0 0.0
    %755 = vmatpush1.msra.mxu0 0.0
    %756 = vmatprep.subr.mxu0 0.0
    %757 = vmatpush1.msra.mxu0 0.0
    %758 = vmatprep.subr.mxu0 0.0
    %759 = vmatpush1.msra.mxu0 0.0
    %760 = vmatprep.subr.mxu0 0.0
    %761 = vmatpush1.msra.mxu0 0.0
    %762 = vmatprep.subr.mxu0 0.0
    %763 = vmatpush1.msra.mxu0 0.0
    %764 = vmatprep.subr.mxu0 0.0
    %765 = vmatpush1.msra.mxu0 0.0
    %766 = vmatprep.subr.mxu0 0.0
    %767 = vmatpush1.msra.mxu0 0.0
    %768 = vmatprep.subr.mxu0 0.0
    %769 = vmatpush1.msra.mxu0 0.0
    %770 = vmatprep.subr.mxu0 0.0
    %771 = vmatpush1.msra.mxu0 0.0
    %772 = vmatprep.subr.mxu0 0.0
    %773 = vmatpush1.msra.mxu0 0.0
    %774 = vmatprep.subr.mxu0 0.0
    %775 = vmatpush1.msra.mxu0 0.0
    %776 = vmatprep.subr.mxu0 0.0
    %777 = vmatpush1.msra.mxu0 0.0
    %778 = vmatprep.subr.mxu0 0.0
    %779 = vmatpush1.msra.mxu0 0.0
    %780 = vmatprep.subr.mxu0 0.0
    %781 = vmatpush1.msra.mxu0 0.0
    %782 = vmatprep.mubr.f32.mxu0 0.0
    %783 = vmatmul.mubr.f32.gmra.mrb[0].mxu0 %v716
    %v784 = vpop.f32.mrb[0].mxu0
    %v785 = vadd.f32 %v79, %v784
    %v786 = vpop.f32.mrb[0].mxu0
    %787 = vdwg.mxu0
    %788 = vmatprep.subr.mxu0 0.0
    %789 = vmatpush1.msra.mxu0 %v485
    %790 = vmatprep.subr.mxu0 0.0
    %791 = vmatpush1.msra.mxu0 %v487
    %792 = vmatprep.subr.mxu0 0.0
    %793 = vmatpush1.msra.mxu0 %v489
    %794 = vmatprep.subr.mxu0 0.0
    %795 = vmatpush1.msra.mxu0 %v491
    %796 = vmatprep.subr.mxu0 0.0
    %797 = vmatpush1.msra.mxu0 0.0
    %798 = vmatprep.subr.mxu0 0.0
    %799 = vmatpush1.msra.mxu0 0.0
    %800 = vmatprep.subr.mxu0 0.0
    %801 = vmatpush1.msra.mxu0 0.0
    %802 = vmatprep.subr.mxu0 0.0
    %803 = vmatpush1.msra.mxu0 0.0
    %804 = vmatprep.subr.mxu0 0.0
    %805 = vmatpush1.msra.mxu0 0.0
    %806 = vmatprep.subr.mxu0 0.0
    %807 = vmatpush1.msra.mxu0 0.0
    %808 = vmatprep.subr.mxu0 0.0
    %809 = vmatpush1.msra.mxu0 0.0
    %810 = vmatprep.subr.mxu0 0.0
    %811 = vmatpush1.msra.mxu0 0.0
    %812 = vmatprep.subr.mxu0 0.0
    %813 = vmatpush1.msra.mxu0 0.0
    %814 = vmatprep.subr.mxu0 0.0
    %815 = vmatpush1.msra.mxu0 0.0
    %816 = vmatprep.subr.mxu0 0.0
    %817 = vmatpush1.msra.mxu0 0.0
    %818 = vmatprep.subr.mxu0 0.0
    %819 = vmatpush1.msra.mxu0 0.0
    %820 = vmatprep.subr.mxu0 0.0
    %821 = vmatpush1.msra.mxu0 0.0
    %822 = vmatprep.subr.mxu0 0.0
    %823 = vmatpush1.msra.mxu0 0.0
    %824 = vmatprep.subr.mxu0 0.0
    %825 = vmatpush1.msra.mxu0 0.0
    %826 = vmatprep.subr.mxu0 0.0
    %827 = vmatpush1.msra.mxu0 0.0
    %828 = vmatprep.subr.mxu0 0.0
    %829 = vmatpush1.msra.mxu0 0.0
    %830 = vmatprep.subr.mxu0 0.0
    %831 = vmatpush1.msra.mxu0 0.0
    %832 = vmatprep.subr.mxu0 0.0
    %833 = vmatpush1.msra.mxu0 0.0
    %834 = vmatprep.subr.mxu0 0.0
    %835 = vmatpush1.msra.mxu0 0.0
    %836 = vmatprep.subr.mxu0 0.0
    %837 = vmatpush1.msra.mxu0 0.0
    %838 = vmatprep.subr.mxu0 0.0
    %839 = vmatpush1.msra.mxu0 0.0
    %840 = vmatprep.subr.mxu0 0.0
    %841 = vmatpush1.msra.mxu0 0.0
    %842 = vmatprep.subr.mxu0 0.0
    %843 = vmatpush1.msra.mxu0 0.0
    %844 = vmatprep.subr.mxu0 0.0
    %845 = vmatpush1.msra.mxu0 0.0
    %846 = vmatprep.subr.mxu0 0.0
    %847 = vmatpush1.msra.mxu0 0.0
    %848 = vmatprep.subr.mxu0 0.0
    %849 = vmatpush1.msra.mxu0 0.0
    %850 = vmatprep.subr.mxu0 0.0
    %851 = vmatpush1.msra.mxu0 0.0
    %852 = vmatprep.mubr.f32.mxu0 0.0
    %853 = vmatmul.mubr.f32.gmra.mrb[0].mxu0 %v716
    %v854 = vpop.f32.mrb[0].mxu0
    %v855 = vadd.f32 %v95, %v854
    %v856 = vpop.f32.mrb[0].mxu0
    %857 = vdwg.mxu0
    %v858 = vmax.f32 %v855, 0.0
    %v859 = vmul.f32 %v858, %v99
    %v860 = vsel %vm568, %v859, 0.0
    %861 = vadd.xlane.f32.xlu0 %v860
    %v862 = vpop.xlane.xlu0 %861
    %v863 = vadd.f32 %v862, %v103
    %v864 = vxor.u32 %v863, 2147483648
    %v865 = vmul.f32 %v864, 1.442695
    %v866 = vpow.pop %v865
    %v867 = vadd.f32 %v866, 1.0
    %v868 = vrcp.pop %v867
    %v869 = vmul.f32 1.0, %v868
    %871 = vrot.lane.b32.xlu0 %v785, 32
    %v872 = vpop.permute.xlu0 %871
    %v874 = vsel %vm198, %v872, 0.0
    %875 = vadd.xlane.f32.xlu0 %v874
    %v876 = vpop.xlane.xlu0 %875
    %v877 = vmul.f32 %v876, %v202
    %v878 = vmul.f32 %v785, %v785
    %880 = vrot.lane.b32.xlu0 %v878, 32
    %v881 = vpop.permute.xlu0 %880
    %v883 = vsel %vm198, %v881, 0.0
    %884 = vadd.xlane.f32.xlu0 %v883
    %v885 = vpop.xlane.xlu0 %884
    %v886 = vmul.f32 %v885, %v202
    %v887 = vmul.f32 %v877, %v877
    %v888 = vsub.f32 %v886, %v887
    %v889 = vsub.f32 %v785, %v877
    %v890 = vadd.f32 %v888, 1e-05
    %v891 = vrsqrt.pop %v890
    %v892 = vmul.f32 %v889, %v891
    %v893 = vmul.f32 %v892, %v604
    %v894 = vadd.f32 %v893, %v609
    %v895 = vmax.f32 %v894, 0.0
    %897 = vrot.lane.b32.xlu0 %v895, 32
    %v898 = vpop.permute.xlu0 %897
    %v899 = vsel %vm124, %v898, 0
    %901 = vmatprep.subr.mxu0 0.0
    %902 = vmatpush1.msra.mxu0 %v64
    %903 = vmatprep.subr.mxu0 0.0
    %904 = vmatpush1.msra.mxu0 %v67
    %905 = vmatprep.subr.mxu0 0.0
    %906 = vmatpush1.msra.mxu0 %v70
    %907 = vmatprep.subr.mxu0 0.0
    %908 = vmatpush1.msra.mxu0 %v73
    %909 = vmatprep.subr.mxu0 0.0
    %910 = vmatpush1.msra.mxu0 0.0
    %911 = vmatprep.subr.mxu0 0.0
    %912 = vmatpush1.msra.mxu0 0.0
    %913 = vmatprep.subr.mxu0 0.0
    %914 = vmatpush1.msra.mxu0 0.0
    %915 = vmatprep.subr.mxu0 0.0
    %916 = vmatpush1.msra.mxu0 0.0
    %917 = vmatprep.subr.mxu0 0.0
    %918 = vmatpush1.msra.mxu0 0.0
    %919 = vmatprep.subr.mxu0 0.0
    %920 = vmatpush1.msra.mxu0 0.0
    %921 = vmatprep.subr.mxu0 0.0
    %922 = vmatpush1.msra.mxu0 0.0
    %923 = vmatprep.subr.mxu0 0.0
    %924 = vmatpush1.msra.mxu0 0.0
    %925 = vmatprep.subr.mxu0 0.0
    %926 = vmatpush1.msra.mxu0 0.0
    %927 = vmatprep.subr.mxu0 0.0
    %928 = vmatpush1.msra.mxu0 0.0
    %929 = vmatprep.subr.mxu0 0.0
    %930 = vmatpush1.msra.mxu0 0.0
    %931 = vmatprep.subr.mxu0 0.0
    %932 = vmatpush1.msra.mxu0 0.0
    %933 = vmatprep.subr.mxu0 0.0
    %934 = vmatpush1.msra.mxu0 0.0
    %935 = vmatprep.subr.mxu0 0.0
    %936 = vmatpush1.msra.mxu0 0.0
    %937 = vmatprep.subr.mxu0 0.0
    %938 = vmatpush1.msra.mxu0 0.0
    %939 = vmatprep.subr.mxu0 0.0
    %940 = vmatpush1.msra.mxu0 0.0
    %941 = vmatprep.subr.mxu0 0.0
    %942 = vmatpush1.msra.mxu0 0.0
    %943 = vmatprep.subr.mxu0 0.0
    %944 = vmatpush1.msra.mxu0 0.0
    %945 = vmatprep.subr.mxu0 0.0
    %946 = vmatpush1.msra.mxu0 0.0
    %947 = vmatprep.subr.mxu0 0.0
    %948 = vmatpush1.msra.mxu0 0.0
    %949 = vmatprep.subr.mxu0 0.0
    %950 = vmatpush1.msra.mxu0 0.0
    %951 = vmatprep.subr.mxu0 0.0
    %952 = vmatpush1.msra.mxu0 0.0
    %953 = vmatprep.subr.mxu0 0.0
    %954 = vmatpush1.msra.mxu0 0.0
    %955 = vmatprep.subr.mxu0 0.0
    %956 = vmatpush1.msra.mxu0 0.0
    %957 = vmatprep.subr.mxu0 0.0
    %958 = vmatpush1.msra.mxu0 0.0
    %959 = vmatprep.subr.mxu0 0.0
    %960 = vmatpush1.msra.mxu0 0.0
    %961 = vmatprep.subr.mxu0 0.0
    %962 = vmatpush1.msra.mxu0 0.0
    %963 = vmatprep.subr.mxu0 0.0
    %964 = vmatpush1.msra.mxu0 0.0
    %965 = vmatprep.mubr.f32.mxu0 0.0
    %966 = vmatmul.mubr.f32.gmra.mrb[0].mxu0 %v899
    %v967 = vpop.f32.mrb[0].mxu0
    %v968 = vadd.f32 %v91, %v967
    %v969 = vpop.f32.mrb[0].mxu0
    %970 = vdwg.mxu0
    %v971 = vadd.f32 %v300, %v785
    %v972 = vxor.u32 %v971, 2147483648
    %v973 = vmul.f32 %v972, 1.442695
    %v974 = vpow.pop %v973
    %v975 = vadd.f32 %v974, 1.0
    %v976 = vrcp.pop %v975
    %v977 = vmul.f32 1.0, %v976
    %978 = vrot.lane.b32.xlu0 %v785, 64
    %v979 = vpop.permute.xlu0 %978
    %v981 = vmul.f32 %v977, %v979
    %983 = vrot.lane.b32.xlu0 %v981, 64
    %v984 = vpop.permute.xlu0 %983
    %v986 = vadd.f32 %v300, %v984
    %v987 = vtanh.pop %v986
    %v988 = vsub.f32 1.0, %v977
    %990 = vrot.lane.b32.xlu0 %v987, 96
    %v991 = vpop.permute.xlu0 %990
    %v993 = vmul.f32 %v988, %v991
    %v994 = vmul.f32 %v977, %v712
    %v995 = vadd.f32 %v993, %v994
    %997 = vrot.lane.b32.xlu0 %v995, 96
    %v998 = vpop.permute.xlu0 %997
    %v999 = vsel %vm124, %v998, 0
    %1001 = vmatprep.subr.mxu0 0.0
    %1002 = vmatpush1.msra.mxu0 %v62
    %1003 = vmatprep.subr.mxu0 0.0
    %1004 = vmatpush1.msra.mxu0 %v65
    %1005 = vmatprep.subr.mxu0 0.0
    %1006 = vmatpush1.msra.mxu0 %v68
    %1007 = vmatprep.subr.mxu0 0.0
    %1008 = vmatpush1.msra.mxu0 %v71
    %1009 = vmatprep.subr.mxu0 0.0
    %1010 = vmatpush1.msra.mxu0 0.0
    %1011 = vmatprep.subr.mxu0 0.0
    %1012 = vmatpush1.msra.mxu0 0.0
    %1013 = vmatprep.subr.mxu0 0.0
    %1014 = vmatpush1.msra.mxu0 0.0
    %1015 = vmatprep.subr.mxu0 0.0
    %1016 = vmatpush1.msra.mxu0 0.0
    %1017 = vmatprep.subr.mxu0 0.0
    %1018 = vmatpush1.msra.mxu0 0.0
    %1019 = vmatprep.subr.mxu0 0.0
    %1020 = vmatpush1.msra.mxu0 0.0
    %1021 = vmatprep.subr.mxu0 0.0
    %1022 = vmatpush1.msra.mxu0 0.0
    %1023 = vmatprep.subr.mxu0 0.0
    %1024 = vmatpush1.msra.mxu0 0.0
    %1025 = vmatprep.subr.mxu0 0.0
    %1026 = vmatpush1.msra.mxu0 0.0
    %1027 = vmatprep.subr.mxu0 0.0
    %1028 = vmatpush1.msra.mxu0 0.0
    %1029 = vmatprep.subr.mxu0 0.0
    %1030 = vmatpush1.msra.mxu0 0.0
    %1031 = vmatprep.subr.mxu0 0.0
    %1032 = vmatpush1.msra.mxu0 0.0
    %1033 = vmatprep.subr.mxu0 0.0
    %1034 = vmatpush1.msra.mxu0 0.0
    %1035 = vmatprep.subr.mxu0 0.0
    %1036 = vmatpush1.msra.mxu0 0.0
    %1037 = vmatprep.subr.mxu0 0.0
    %1038 = vmatpush1.msra.mxu0 0.0
    %1039 = vmatprep.subr.mxu0 0.0
    %1040 = vmatpush1.msra.mxu0 0.0
    %1041 = vmatprep.subr.mxu0 0.0
    %1042 = vmatpush1.msra.mxu0 0.0
    %1043 = vmatprep.subr.mxu0 0.0
    %1044 = vmatpush1.msra.mxu0 0.0
    %1045 = vmatprep.subr.mxu0 0.0
    %1046 = vmatpush1.msra.mxu0 0.0
    %1047 = vmatprep.subr.mxu0 0.0
    %1048 = vmatpush1.msra.mxu0 0.0
    %1049 = vmatprep.subr.mxu0 0.0
    %1050 = vmatpush1.msra.mxu0 0.0
    %1051 = vmatprep.subr.mxu0 0.0
    %1052 = vmatpush1.msra.mxu0 0.0
    %1053 = vmatprep.subr.mxu0 0.0
    %1054 = vmatpush1.msra.mxu0 0.0
    %1055 = vmatprep.subr.mxu0 0.0
    %1056 = vmatpush1.msra.mxu0 0.0
    %1057 = vmatprep.subr.mxu0 0.0
    %1058 = vmatpush1.msra.mxu0 0.0
    %1059 = vmatprep.subr.mxu0 0.0
    %1060 = vmatpush1.msra.mxu0 0.0
    %1061 = vmatprep.subr.mxu0 0.0
    %1062 = vmatpush1.msra.mxu0 0.0
    %1063 = vmatprep.subr.mxu0 0.0
    %1064 = vmatpush1.msra.mxu0 0.0
    %1065 = vmatprep.mubr.f32.mxu0 0.0
    %1066 = vmatmul.mubr.f32.gmra.mrb[0].mxu0 %v999
    %v1067 = vpop.f32.mrb[0].mxu0
    %v1068 = vadd.f32 %v79, %v1067
    %v1069 = vpop.f32.mrb[0].mxu0
    %1070 = vdwg.mxu0
    %1071 = vmatprep.subr.mxu0 0.0
    %1072 = vmatpush1.msra.mxu0 %v485
    %1073 = vmatprep.subr.mxu0 0.0
    %1074 = vmatpush1.msra.mxu0 %v487
    %1075 = vmatprep.subr.mxu0 0.0
    %1076 = vmatpush1.msra.mxu0 %v489
    %1077 = vmatprep.subr.mxu0 0.0
    %1078 = vmatpush1.msra.mxu0 %v491
    %1079 = vmatprep.subr.mxu0 0.0
    %1080 = vmatpush1.msra.mxu0 0.0
    %1081 = vmatprep.subr.mxu0 0.0
    %1082 = vmatpush1.msra.mxu0 0.0
    %1083 = vmatprep.subr.mxu0 0.0
    %1084 = vmatpush1.msra.mxu0 0.0
    %1085 = vmatprep.subr.mxu0 0.0
    %1086 = vmatpush1.msra.mxu0 0.0
    %1087 = vmatprep.subr.mxu0 0.0
    %1088 = vmatpush1.msra.mxu0 0.0
    %1089 = vmatprep.subr.mxu0 0.0
    %1090 = vmatpush1.msra.mxu0 0.0
    %1091 = vmatprep.subr.mxu0 0.0
    %1092 = vmatpush1.msra.mxu0 0.0
    %1093 = vmatprep.subr.mxu0 0.0
    %1094 = vmatpush1.msra.mxu0 0.0
    %1095 = vmatprep.subr.mxu0 0.0
    %1096 = vmatpush1.msra.mxu0 0.0
    %1097 = vmatprep.subr.mxu0 0.0
    %1098 = vmatpush1.msra.mxu0 0.0
    %1099 = vmatprep.subr.mxu0 0.0
    %1100 = vmatpush1.msra.mxu0 0.0
    %1101 = vmatprep.subr.mxu0 0.0
    %1102 = vmatpush1.msra.mxu0 0.0
    %1103 = vmatprep.subr.mxu0 0.0
    %1104 = vmatpush1.msra.mxu0 0.0
    %1105 = vmatprep.subr.mxu0 0.0
    %1106 = vmatpush1.msra.mxu0 0.0
    %1107 = vmatprep.subr.mxu0 0.0
    %1108 = vmatpush1.msra.mxu0 0.0
    %1109 = vmatprep.subr.mxu0 0.0
    %1110 = vmatpush1.msra.mxu0 0.0
    %1111 = vmatprep.subr.mxu0 0.0
    %1112 = vmatpush1.msra.mxu0 0.0
    %1113 = vmatprep.subr.mxu0 0.0
    %1114 = vmatpush1.msra.mxu0 0.0
    %1115 = vmatprep.subr.mxu0 0.0
    %1116 = vmatpush1.msra.mxu0 0.0
    %1117 = vmatprep.subr.mxu0 0.0
    %1118 = vmatpush1.msra.mxu0 0.0
    %1119 = vmatprep.subr.mxu0 0.0
    %1120 = vmatpush1.msra.mxu0 0.0
    %1121 = vmatprep.subr.mxu0 0.0
    %1122 = vmatpush1.msra.mxu0 0.0
    %1123 = vmatprep.subr.mxu0 0.0
    %1124 = vmatpush1.msra.mxu0 0.0
    %1125 = vmatprep.subr.mxu0 0.0
    %1126 = vmatpush1.msra.mxu0 0.0
    %1127 = vmatprep.subr.mxu0 0.0
    %1128 = vmatpush1.msra.mxu0 0.0
    %1129 = vmatprep.subr.mxu0 0.0
    %1130 = vmatpush1.msra.mxu0 0.0
    %1131 = vmatprep.subr.mxu0 0.0
    %1132 = vmatpush1.msra.mxu0 0.0
    %1133 = vmatprep.subr.mxu0 0.0
    %1134 = vmatpush1.msra.mxu0 0.0
    %1135 = vmatprep.mubr.f32.mxu0 0.0
    %1136 = vmatmul.mubr.f32.gmra.mrb[0].mxu0 %v999
    %v1137 = vpop.f32.mrb[0].mxu0
    %v1138 = vadd.f32 %v95, %v1137
    %v1139 = vpop.f32.mrb[0].mxu0
    %1140 = vdwg.mxu0
    %v1141 = vmax.f32 %v1138, 0.0
    %v1142 = vmul.f32 %v1141, %v99
    %v1143 = vsel %vm568, %v1142, 0.0
    %1144 = vadd.xlane.f32.xlu0 %v1143
    %v1145 = vpop.xlane.xlu0 %1144
    %v1146 = vadd.f32 %v1145, %v103
    %v1147 = vxor.u32 %v1146, 2147483648
    %v1148 = vmul.f32 %v1147, 1.442695
    %v1149 = vpow.pop %v1148
    %v1150 = vadd.f32 %v1149, 1.0
    %v1151 = vrcp.pop %v1150
    %v1152 = vmul.f32 1.0, %v1151
    %1154 = vrot.lane.b32.xlu0 %v1068, 32
    %v1155 = vpop.permute.xlu0 %1154
    %v1157 = vsel %vm198, %v1155, 0.0
    %1158 = vadd.xlane.f32.xlu0 %v1157
    %v1159 = vpop.xlane.xlu0 %1158
    %v1160 = vmul.f32 %v1159, %v202
    %v1161 = vmul.f32 %v1068, %v1068
    %1163 = vrot.lane.b32.xlu0 %v1161, 32
    %v1164 = vpop.permute.xlu0 %1163
    %v1166 = vsel %vm198, %v1164, 0.0
    %1167 = vadd.xlane.f32.xlu0 %v1166
    %v1168 = vpop.xlane.xlu0 %1167
    %v1169 = vmul.f32 %v1168, %v202
    %v1170 = vmul.f32 %v1160, %v1160
    %v1171 = vsub.f32 %v1169, %v1170
    %v1172 = vsub.f32 %v1068, %v1160
    %v1173 = vadd.f32 %v1171, 1e-05
    %v1174 = vrsqrt.pop %v1173
    %v1175 = vmul.f32 %v1172, %v1174
    %v1176 = vmul.f32 %v1175, %v604
    %v1177 = vadd.f32 %v1176, %v609
    %v1178 = vmax.f32 %v1177, 0.0
    %1180 = vrot.lane.b32.xlu0 %v1178, 32
    %v1181 = vpop.permute.xlu0 %1180
    %v1182 = vsel %vm124, %v1181, 0
    %1184 = vmatprep.subr.mxu0 0.0
    %1185 = vmatpush1.msra.mxu0 %v64
    %1186 = vmatprep.subr.mxu0 0.0
    %1187 = vmatpush1.msra.mxu0 %v67
    %1188 = vmatprep.subr.mxu0 0.0
    %1189 = vmatpush1.msra.mxu0 %v70
    %1190 = vmatprep.subr.mxu0 0.0
    %1191 = vmatpush1.msra.mxu0 %v73
    %1192 = vmatprep.subr.mxu0 0.0
    %1193 = vmatpush1.msra.mxu0 0.0
    %1194 = vmatprep.subr.mxu0 0.0
    %1195 = vmatpush1.msra.mxu0 0.0
    %1196 = vmatprep.subr.mxu0 0.0
    %1197 = vmatpush1.msra.mxu0 0.0
    %1198 = vmatprep.subr.mxu0 0.0
    %1199 = vmatpush1.msra.mxu0 0.0
    %1200 = vmatprep.subr.mxu0 0.0
    %1201 = vmatpush1.msra.mxu0 0.0
    %1202 = vmatprep.subr.mxu0 0.0
    %1203 = vmatpush1.msra.mxu0 0.0
    %1204 = vmatprep.subr.mxu0 0.0
    %1205 = vmatpush1.msra.mxu0 0.0
    %1206 = vmatprep.subr.mxu0 0.0
    %1207 = vmatpush1.msra.mxu0 0.0
    %1208 = vmatprep.subr.mxu0 0.0
    %1209 = vmatpush1.msra.mxu0 0.0
    %1210 = vmatprep.subr.mxu0 0.0
    %1211 = vmatpush1.msra.mxu0 0.0
    %1212 = vmatprep.subr.mxu0 0.0
    %1213 = vmatpush1.msra.mxu0 0.0
    %1214 = vmatprep.subr.mxu0 0.0
    %1215 = vmatpush1.msra.mxu0 0.0
    %1216 = vmatprep.subr.mxu0 0.0
    %1217 = vmatpush1.msra.mxu0 0.0
    %1218 = vmatprep.subr.mxu0 0.0
    %1219 = vmatpush1.msra.mxu0 0.0
    %1220 = vmatprep.subr.mxu0 0.0
    %1221 = vmatpush1.msra.mxu0 0.0
    %1222 = vmatprep.subr.mxu0 0.0
    %1223 = vmatpush1.msra.mxu0 0.0
    %1224 = vmatprep.subr.mxu0 0.0
    %1225 = vmatpush1.msra.mxu0 0.0
    %1226 = vmatprep.subr.mxu0 0.0
    %1227 = vmatpush1.msra.mxu0 0.0
    %1228 = vmatprep.subr.mxu0 0.0
    %1229 = vmatpush1.msra.mxu0 0.0
    %1230 = vmatprep.subr.mxu0 0.0
    %1231 = vmatpush1.msra.mxu0 0.0
    %1232 = vmatprep.subr.mxu0 0.0
    %1233 = vmatpush1.msra.mxu0 0.0
    %1234 = vmatprep.subr.mxu0 0.0
    %1235 = vmatpush1.msra.mxu0 0.0
    %1236 = vmatprep.subr.mxu0 0.0
    %1237 = vmatpush1.msra.mxu0 0.0
    %1238 = vmatprep.subr.mxu0 0.0
    %1239 = vmatpush1.msra.mxu0 0.0
    %1240 = vmatprep.subr.mxu0 0.0
    %1241 = vmatpush1.msra.mxu0 0.0
    %1242 = vmatprep.subr.mxu0 0.0
    %1243 = vmatpush1.msra.mxu0 0.0
    %1244 = vmatprep.subr.mxu0 0.0
    %1245 = vmatpush1.msra.mxu0 0.0
    %1246 = vmatprep.subr.mxu0 0.0
    %1247 = vmatpush1.msra.mxu0 0.0
    %1248 = vmatprep.mubr.f32.mxu0 0.0
    %1249 = vmatmul.mubr.f32.gmra.mrb[0].mxu0 %v1182
    %v1250 = vpop.f32.mrb[0].mxu0
    %v1251 = vadd.f32 %v91, %v1250
    %v1252 = vpop.f32.mrb[0].mxu0
    %1253 = vdwg.mxu0
    %v1254 = vadd.f32 %v300, %v1068
    %v1255 = vxor.u32 %v1254, 2147483648
    %v1256 = vmul.f32 %v1255, 1.442695
    %v1257 = vpow.pop %v1256
    %v1258 = vadd.f32 %v1257, 1.0
    %v1259 = vrcp.pop %v1258
    %v1260 = vmul.f32 1.0, %v1259
    %1261 = vrot.lane.b32.xlu0 %v1068, 64
    %v1262 = vpop.permute.xlu0 %1261
    %v1264 = vmul.f32 %v1260, %v1262
    %1266 = vrot.lane.b32.xlu0 %v1264, 64
    %v1267 = vpop.permute.xlu0 %1266
    %v1269 = vadd.f32 %v300, %v1267
    %v1270 = vtanh.pop %v1269
    %v1271 = vsub.f32 1.0, %v1260
    %1273 = vrot.lane.b32.xlu0 %v1270, 96
    %v1274 = vpop.permute.xlu0 %1273
    %v1276 = vmul.f32 %v1271, %v1274
    %v1277 = vmul.f32 %v1260, %v995
    %v1278 = vadd.f32 %v1276, %v1277
    %1280 = vrot.lane.b32.xlu0 %v1278, 96
    %v1281 = vpop.permute.xlu0 %1280
    %v1282 = vsel %vm124, %v1281, 0
    %1284 = vmatprep.subr.mxu0 0.0
    %1285 = vmatpush1.msra.mxu0 %v62
    %1286 = vmatprep.subr.mxu0 0.0
    %1287 = vmatpush1.msra.mxu0 %v65
    %1288 = vmatprep.subr.mxu0 0.0
    %1289 = vmatpush1.msra.mxu0 %v68
    %1290 = vmatprep.subr.mxu0 0.0
    %1291 = vmatpush1.msra.mxu0 %v71
    %1292 = vmatprep.subr.mxu0 0.0
    %1293 = vmatpush1.msra.mxu0 0.0
    %1294 = vmatprep.subr.mxu0 0.0
    %1295 = vmatpush1.msra.mxu0 0.0
    %1296 = vmatprep.subr.mxu0 0.0
    %1297 = vmatpush1.msra.mxu0 0.0
    %1298 = vmatprep.subr.mxu0 0.0
    %1299 = vmatpush1.msra.mxu0 0.0
    %1300 = vmatprep.subr.mxu0 0.0
    %1301 = vmatpush1.msra.mxu0 0.0
    %1302 = vmatprep.subr.mxu0 0.0
    %1303 = vmatpush1.msra.mxu0 0.0
    %1304 = vmatprep.subr.mxu0 0.0
    %1305 = vmatpush1.msra.mxu0 0.0
    %1306 = vmatprep.subr.mxu0 0.0
    %1307 = vmatpush1.msra.mxu0 0.0
    %1308 = vmatprep.subr.mxu0 0.0
    %1309 = vmatpush1.msra.mxu0 0.0
    %1310 = vmatprep.subr.mxu0 0.0
    %1311 = vmatpush1.msra.mxu0 0.0
    %1312 = vmatprep.subr.mxu0 0.0
    %1313 = vmatpush1.msra.mxu0 0.0
    %1314 = vmatprep.subr.mxu0 0.0
    %1315 = vmatpush1.msra.mxu0 0.0
    %1316 = vmatprep.subr.mxu0 0.0
    %1317 = vmatpush1.msra.mxu0 0.0
    %1318 = vmatprep.subr.mxu0 0.0
    %1319 = vmatpush1.msra.mxu0 0.0
    %1320 = vmatprep.subr.mxu0 0.0
    %1321 = vmatpush1.msra.mxu0 0.0
    %1322 = vmatprep.subr.mxu0 0.0
    %1323 = vmatpush1.msra.mxu0 0.0
    %1324 = vmatprep.subr.mxu0 0.0
    %1325 = vmatpush1.msra.mxu0 0.0
    %1326 = vmatprep.subr.mxu0 0.0
    %1327 = vmatpush1.msra.mxu0 0.0
    %1328 = vmatprep.subr.mxu0 0.0
    %1329 = vmatpush1.msra.mxu0 0.0
    %1330 = vmatprep.subr.mxu0 0.0
    %1331 = vmatpush1.msra.mxu0 0.0
    %1332 = vmatprep.subr.mxu0 0.0
    %1333 = vmatpush1.msra.mxu0 0.0
    %1334 = vmatprep.subr.mxu0 0.0
    %1335 = vmatpush1.msra.mxu0 0.0
    %1336 = vmatprep.subr.mxu0 0.0
    %1337 = vmatpush1.msra.mxu0 0.0
    %1338 = vmatprep.subr.mxu0 0.0
    %1339 = vmatpush1.msra.mxu0 0.0
    %1340 = vmatprep.subr.mxu0 0.0
    %1341 = vmatpush1.msra.mxu0 0.0
    %1342 = vmatprep.subr.mxu0 0.0
    %1343 = vmatpush1.msra.mxu0 0.0
    %1344 = vmatprep.subr.mxu0 0.0
    %1345 = vmatpush1.msra.mxu0 0.0
    %1346 = vmatprep.subr.mxu0 0.0
    %1347 = vmatpush1.msra.mxu0 0.0
    %1348 = vmatprep.mubr.f32.mxu0 0.0
    %1349 = vmatmul.mubr.f32.gmra.mrb[0].mxu0 %v1282
    %v1350 = vpop.f32.mrb[0].mxu0
    %v1351 = vadd.f32 %v79, %v1350
    %v1352 = vpop.f32.mrb[0].mxu0
    %1353 = vdwg.mxu0
    %1354 = vmatprep.subr.mxu0 0.0
    %1355 = vmatpush1.msra.mxu0 %v485
    %1356 = vmatprep.subr.mxu0 0.0
    %1357 = vmatpush1.msra.mxu0 %v487
    %1358 = vmatprep.subr.mxu0 0.0
    %1359 = vmatpush1.msra.mxu0 %v489
    %1360 = vmatprep.subr.mxu0 0.0
    %1361 = vmatpush1.msra.mxu0 %v491
    %1362 = vmatprep.subr.mxu0 0.0
    %1363 = vmatpush1.msra.mxu0 0.0
    %1364 = vmatprep.subr.mxu0 0.0
    %1365 = vmatpush1.msra.mxu0 0.0
    %1366 = vmatprep.subr.mxu0 0.0
    %1367 = vmatpush1.msra.mxu0 0.0
    %1368 = vmatprep.subr.mxu0 0.0
    %1369 = vmatpush1.msra.mxu0 0.0
    %1370 = vmatprep.subr.mxu0 0.0
    %1371 = vmatpush1.msra.mxu0 0.0
    %1372 = vmatprep.subr.mxu0 0.0
    %1373 = vmatpush1.msra.mxu0 0.0
    %1374 = vmatprep.subr.mxu0 0.0
    %1375 = vmatpush1.msra.mxu0 0.0
    %1376 = vmatprep.subr.mxu0 0.0
    %1377 = vmatpush1.msra.mxu0 0.0
    %1378 = vmatprep.subr.mxu0 0.0
    %1379 = vmatpush1.msra.mxu0 0.0
    %1380 = vmatprep.subr.mxu0 0.0
    %1381 = vmatpush1.msra.mxu0 0.0
    %1382 = vmatprep.subr.mxu0 0.0
    %1383 = vmatpush1.msra.mxu0 0.0
    %1384 = vmatprep.subr.mxu0 0.0
    %1385 = vmatpush1.msra.mxu0 0.0
    %1386 = vmatprep.subr.mxu0 0.0
    %1387 = vmatpush1.msra.mxu0 0.0
    %1388 = vmatprep.subr.mxu0 0.0
    %1389 = vmatpush1.msra.mxu0 0.0
    %1390 = vmatprep.subr.mxu0 0.0
    %1391 = vmatpush1.msra.mxu0 0.0
    %1392 = vmatprep.subr.mxu0 0.0
    %1393 = vmatpush1.msra.mxu0 0.0
    %1394 = vmatprep.subr.mxu0 0.0
    %1395 = vmatpush1.msra.mxu0 0.0
    %1396 = vmatprep.subr.mxu0 0.0
    %1397 = vmatpush1.msra.mxu0 0.0
    %1398 = vmatprep.subr.mxu0 0.0
    %1399 = vmatpush1.msra.mxu0 0.0
    %1400 = vmatprep.subr.mxu0 0.0
    %1401 = vmatpush1.msra.mxu0 0.0
    %1402 = vmatprep.subr.mxu0 0.0
    %1403 = vmatpush1.msra.mxu0 0.0
    %1404 = vmatprep.subr.mxu0 0.0
    %1405 = vmatpush1.msra.mxu0 0.0
    %1406 = vmatprep.subr.mxu0 0.0
    %1407 = vmatpush1.msra.mxu0 0.0
    %1408 = vmatprep.subr.mxu0 0.0
    %1409 = vmatpush1.msra.mxu0 0.0
    %1410 = vmatprep.subr.mxu0 0.0
    %1411 = vmatpush1.msra.mxu0 0.0
    %1412 = vmatprep.subr.mxu0 0.0
    %1413 = vmatpush1.msra.mxu0 0.0
    %1414 = vmatprep.subr.mxu0 0.0
    %1415 = vmatpush1.msra.mxu0 0.0
    %1416 = vmatprep.subr.mxu0 0.0
    %1417 = vmatpush1.msra.mxu0 0.0
    %1418 = vmatprep.mubr.f32.mxu0 0.0
    %1419 = vmatmul.mubr.f32.gmra.mrb[0].mxu0 %v1282
    %v1420 = vpop.f32.mrb[0].mxu0
    %v1421 = vadd.f32 %v95, %v1420
    %v1422 = vpop.f32.mrb[0].mxu0
    %1423 = vdwg.mxu0
    %v1424 = vmax.f32 %v1421, 0.0
    %v1425 = vmul.f32 %v1424, %v99
    %v1426 = vsel %vm568, %v1425, 0.0
    %1427 = vadd.xlane.f32.xlu0 %v1426
    %v1428 = vpop.xlane.xlu0 %1427
    %v1429 = vadd.f32 %v1428, %v103
    %v1430 = vxor.u32 %v1429, 2147483648
    %v1431 = vmul.f32 %v1430, 1.442695
    %v1432 = vpow.pop %v1431
    %v1433 = vadd.f32 %v1432, 1.0
    %v1434 = vrcp.pop %v1433
    %v1435 = vmul.f32 1.0, %v1434
    %1437 = vrot.lane.b32.xlu0 %v1351, 32
    %v1438 = vpop.permute.xlu0 %1437
    %v1440 = vsel %vm198, %v1438, 0.0
    %1441 = vadd.xlane.f32.xlu0 %v1440
    %v1442 = vpop.xlane.xlu0 %1441
    %v1443 = vmul.f32 %v1442, %v202
    %v1444 = vmul.f32 %v1351, %v1351
    %1446 = vrot.lane.b32.xlu0 %v1444, 32
    %v1447 = vpop.permute.xlu0 %1446
    %v1449 = vsel %vm198, %v1447, 0.0
    %1450 = vadd.xlane.f32.xlu0 %v1449
    %v1451 = vpop.xlane.xlu0 %1450
    %v1452 = vmul.f32 %v1451, %v202
    %v1453 = vmul.f32 %v1443, %v1443
    %v1454 = vsub.f32 %v1452, %v1453
    %v1455 = vsub.f32 %v1351, %v1443
    %v1456 = vadd.f32 %v1454, 1e-05
    %v1457 = vrsqrt.pop %v1456
    %v1458 = vmul.f32 %v1455, %v1457
    %v1459 = vmul.f32 %v1458, %v604
    %v1460 = vadd.f32 %v1459, %v609
    %v1461 = vmax.f32 %v1460, 0.0
    %1463 = vrot.lane.b32.xlu0 %v1461, 32
    %v1464 = vpop.permute.xlu0 %1463
    %v1465 = vsel %vm124, %v1464, 0
    %1467 = vmatprep.subr.mxu0 0.0
    %1468 = vmatpush1.msra.mxu0 %v64
    %1469 = vmatprep.subr.mxu0 0.0
    %1470 = vmatpush1.msra.mxu0 %v67
    %1471 = vmatprep.subr.mxu0 0.0
    %1472 = vmatpush1.msra.mxu0 %v70
    %1473 = vmatprep.subr.mxu0 0.0
    %1474 = vmatpush1.msra.mxu0 %v73
    %1475 = vmatprep.subr.mxu0 0.0
    %1476 = vmatpush1.msra.mxu0 0.0
    %1477 = vmatprep.subr.mxu0 0.0
    %1478 = vmatpush1.msra.mxu0 0.0
    %1479 = vmatprep.subr.mxu0 0.0
    %1480 = vmatpush1.msra.mxu0 0.0
    %1481 = vmatprep.subr.mxu0 0.0
    %1482 = vmatpush1.msra.mxu0 0.0
    %1483 = vmatprep.subr.mxu0 0.0
    %1484 = vmatpush1.msra.mxu0 0.0
    %1485 = vmatprep.subr.mxu0 0.0
    %1486 = vmatpush1.msra.mxu0 0.0
    %1487 = vmatprep.subr.mxu0 0.0
    %1488 = vmatpush1.msra.mxu0 0.0
    %1489 = vmatprep.subr.mxu0 0.0
    %1490 = vmatpush1.msra.mxu0 0.0
    %1491 = vmatprep.subr.mxu0 0.0
    %1492 = vmatpush1.msra.mxu0 0.0
    %1493 = vmatprep.subr.mxu0 0.0
    %1494 = vmatpush1.msra.mxu0 0.0
    %1495 = vmatprep.subr.mxu0 0.0
    %1496 = vmatpush1.msra.mxu0 0.0
    %1497 = vmatprep.subr.mxu0 0.0
    %1498 = vmatpush1.msra.mxu0 0.0
    %1499 = vmatprep.subr.mxu0 0.0
    %1500 = vmatpush1.msra.mxu0 0.0
    %1501 = vmatprep.subr.mxu0 0.0
    %1502 = vmatpush1.msra.mxu0 0.0
    %1503 = vmatprep.subr.mxu0 0.0
    %1504 = vmatpush1.msra.mxu0 0.0
    %1505 = vmatprep.subr.mxu0 0.0
    %1506 = vmatpush1.msra.mxu0 0.0
    %1507 = vmatprep.subr.mxu0 0.0
    %1508 = vmatpush1.msra.mxu0 0.0
    %1509 = vmatprep.subr.mxu0 0.0
    %1510 = vmatpush1.msra.mxu0 0.0
    %1511 = vmatprep.subr.mxu0 0.0
    %1512 = vmatpush1.msra.mxu0 0.0
    %1513 = vmatprep.subr.mxu0 0.0
    %1514 = vmatpush1.msra.mxu0 0.0
    %1515 = vmatprep.subr.mxu0 0.0
    %1516 = vmatpush1.msra.mxu0 0.0
    %1517 = vmatprep.subr.mxu0 0.0
    %1518 = vmatpush1.msra.mxu0 0.0
    %1519 = vmatprep.subr.mxu0 0.0
    %1520 = vmatpush1.msra.mxu0 0.0
    %1521 = vmatprep.subr.mxu0 0.0
    %1522 = vmatpush1.msra.mxu0 0.0
    %1523 = vmatprep.subr.mxu0 0.0
    %1524 = vmatpush1.msra.mxu0 0.0
    %1525 = vmatprep.subr.mxu0 0.0
    %1526 = vmatpush1.msra.mxu0 0.0
    %1527 = vmatprep.subr.mxu0 0.0
    %1528 = vmatpush1.msra.mxu0 0.0
    %1529 = vmatprep.subr.mxu0 0.0
    %1530 = vmatpush1.msra.mxu0 0.0
    %1531 = vmatprep.mubr.f32.mxu0 0.0
    %1532 = vmatmul.mubr.f32.gmra.mrb[0].mxu0 %v1465
    %v1533 = vpop.f32.mrb[0].mxu0
    %v1534 = vadd.f32 %v91, %v1533
    %v1535 = vpop.f32.mrb[0].mxu0
    %1536 = vdwg.mxu0
    %v1537 = vadd.f32 %v300, %v1351
    %v1538 = vxor.u32 %v1537, 2147483648
    %v1539 = vmul.f32 %v1538, 1.442695
    %v1540 = vpow.pop %v1539
    %v1541 = vadd.f32 %v1540, 1.0
    %v1542 = vrcp.pop %v1541
    %v1543 = vmul.f32 1.0, %v1542
    %1544 = vrot.lane.b32.xlu0 %v1351, 64
    %v1545 = vpop.permute.xlu0 %1544
    %v1547 = vmul.f32 %v1543, %v1545
    %1549 = vrot.lane.b32.xlu0 %v1547, 64
    %v1550 = vpop.permute.xlu0 %1549
    %v1552 = vadd.f32 %v300, %v1550
    %v1553 = vtanh.pop %v1552
    %v1554 = vsub.f32 1.0, %v1543
    %1556 = vrot.lane.b32.xlu0 %v1553, 96
    %v1557 = vpop.permute.xlu0 %1556
    %v1559 = vmul.f32 %v1554, %v1557
    %v1560 = vmul.f32 %v1543, %v1278
    %v1561 = vadd.f32 %v1559, %v1560
    %1563 = vrot.lane.b32.xlu0 %v1561, 96
    %v1564 = vpop.permute.xlu0 %1563
    %v1565 = vsel %vm124, %v1564, 0
    %1567 = vmatprep.subr.mxu0 0.0
    %1568 = vmatpush1.msra.mxu0 %v62
    %1569 = vmatprep.subr.mxu0 0.0
    %1570 = vmatpush1.msra.mxu0 %v65
    %1571 = vmatprep.subr.mxu0 0.0
    %1572 = vmatpush1.msra.mxu0 %v68
    %1573 = vmatprep.subr.mxu0 0.0
    %1574 = vmatpush1.msra.mxu0 %v71
    %1575 = vmatprep.subr.mxu0 0.0
    %1576 = vmatpush1.msra.mxu0 0.0
    %1577 = vmatprep.subr.mxu0 0.0
    %1578 = vmatpush1.msra.mxu0 0.0
    %1579 = vmatprep.subr.mxu0 0.0
    %1580 = vmatpush1.msra.mxu0 0.0
    %1581 = vmatprep.subr.mxu0 0.0
    %1582 = vmatpush1.msra.mxu0 0.0
    %1583 = vmatprep.subr.mxu0 0.0
    %1584 = vmatpush1.msra.mxu0 0.0
    %1585 = vmatprep.subr.mxu0 0.0
    %1586 = vmatpush1.msra.mxu0 0.0
    %1587 = vmatprep.subr.mxu0 0.0
    %1588 = vmatpush1.msra.mxu0 0.0
    %1589 = vmatprep.subr.mxu0 0.0
    %1590 = vmatpush1.msra.mxu0 0.0
    %1591 = vmatprep.subr.mxu0 0.0
    %1592 = vmatpush1.msra.mxu0 0.0
    %1593 = vmatprep.subr.mxu0 0.0
    %1594 = vmatpush1.msra.mxu0 0.0
    %1595 = vmatprep.subr.mxu0 0.0
    %1596 = vmatpush1.msra.mxu0 0.0
    %1597 = vmatprep.subr.mxu0 0.0
    %1598 = vmatpush1.msra.mxu0 0.0
    %1599 = vmatprep.subr.mxu0 0.0
    %1600 = vmatpush1.msra.mxu0 0.0
    %1601 = vmatprep.subr.mxu0 0.0
    %1602 = vmatpush1.msra.mxu0 0.0
    %1603 = vmatprep.subr.mxu0 0.0
    %1604 = vmatpush1.msra.mxu0 0.0
    %1605 = vmatprep.subr.mxu0 0.0
    %1606 = vmatpush1.msra.mxu0 0.0
    %1607 = vmatprep.subr.mxu0 0.0
    %1608 = vmatpush1.msra.mxu0 0.0
    %1609 = vmatprep.subr.mxu0 0.0
    %1610 = vmatpush1.msra.mxu0 0.0
    %1611 = vmatprep.subr.mxu0 0.0
    %1612 = vmatpush1.msra.mxu0 0.0
    %1613 = vmatprep.subr.mxu0 0.0
    %1614 = vmatpush1.msra.mxu0 0.0
    %1615 = vmatprep.subr.mxu0 0.0
    %1616 = vmatpush1.msra.mxu0 0.0
    %1617 = vmatprep.subr.mxu0 0.0
    %1618 = vmatpush1.msra.mxu0 0.0
    %1619 = vmatprep.subr.mxu0 0.0
    %1620 = vmatpush1.msra.mxu0 0.0
    %1621 = vmatprep.subr.mxu0 0.0
    %1622 = vmatpush1.msra.mxu0 0.0
    %1623 = vmatprep.subr.mxu0 0.0
    %1624 = vmatpush1.msra.mxu0 0.0
    %1625 = vmatprep.subr.mxu0 0.0
    %1626 = vmatpush1.msra.mxu0 0.0
    %1627 = vmatprep.subr.mxu0 0.0
    %1628 = vmatpush1.msra.mxu0 0.0
    %1629 = vmatprep.subr.mxu0 0.0
    %1630 = vmatpush1.msra.mxu0 0.0
    %1631 = vmatprep.mubr.f32.mxu0 0.0
    %1632 = vmatmul.mubr.f32.gmra.mrb[0].mxu0 %v1565
    %v1633 = vpop.f32.mrb[0].mxu0
    %v1634 = vadd.f32 %v79, %v1633
    %v1635 = vpop.f32.mrb[0].mxu0
    %1636 = vdwg.mxu0
    %1637 = vmatprep.subr.mxu0 0.0
    %1638 = vmatpush1.msra.mxu0 %v485
    %1639 = vmatprep.subr.mxu0 0.0
    %1640 = vmatpush1.msra.mxu0 %v487
    %1641 = vmatprep.subr.mxu0 0.0
    %1642 = vmatpush1.msra.mxu0 %v489
    %1643 = vmatprep.subr.mxu0 0.0
    %1644 = vmatpush1.msra.mxu0 %v491
    %1645 = vmatprep.subr.mxu0 0.0
    %1646 = vmatpush1.msra.mxu0 0.0
    %1647 = vmatprep.subr.mxu0 0.0
    %1648 = vmatpush1.msra.mxu0 0.0
    %1649 = vmatprep.subr.mxu0 0.0
    %1650 = vmatpush1.msra.mxu0 0.0
    %1651 = vmatprep.subr.mxu0 0.0
    %1652 = vmatpush1.msra.mxu0 0.0
    %1653 = vmatprep.subr.mxu0 0.0
    %1654 = vmatpush1.msra.mxu0 0.0
    %1655 = vmatprep.subr.mxu0 0.0
    %1656 = vmatpush1.msra.mxu0 0.0
    %1657 = vmatprep.subr.mxu0 0.0
    %1658 = vmatpush1.msra.mxu0 0.0
    %1659 = vmatprep.subr.mxu0 0.0
    %1660 = vmatpush1.msra.mxu0 0.0
    %1661 = vmatprep.subr.mxu0 0.0
    %1662 = vmatpush1.msra.mxu0 0.0
    %1663 = vmatprep.subr.mxu0 0.0
    %1664 = vmatpush1.msra.mxu0 0.0
    %1665 = vmatprep.subr.mxu0 0.0
    %1666 = vmatpush1.msra.mxu0 0.0
    %1667 = vmatprep.subr.mxu0 0.0
    %1668 = vmatpush1.msra.mxu0 0.0
    %1669 = vmatprep.subr.mxu0 0.0
    %1670 = vmatpush1.msra.mxu0 0.0
    %1671 = vmatprep.subr.mxu0 0.0
    %1672 = vmatpush1.msra.mxu0 0.0
    %1673 = vmatprep.subr.mxu0 0.0
    %1674 = vmatpush1.msra.mxu0 0.0
    %1675 = vmatprep.subr.mxu0 0.0
    %1676 = vmatpush1.msra.mxu0 0.0
    %1677 = vmatprep.subr.mxu0 0.0
    %1678 = vmatpush1.msra.mxu0 0.0
    %1679 = vmatprep.subr.mxu0 0.0
    %1680 = vmatpush1.msra.mxu0 0.0
    %1681 = vmatprep.subr.mxu0 0.0
    %1682 = vmatpush1.msra.mxu0 0.0
    %1683 = vmatprep.subr.mxu0 0.0
    %1684 = vmatpush1.msra.mxu0 0.0
    %1685 = vmatprep.subr.mxu0 0.0
    %1686 = vmatpush1.msra.mxu0 0.0
    %1687 = vmatprep.subr.mxu0 0.0
    %1688 = vmatpush1.msra.mxu0 0.0
    %1689 = vmatprep.subr.mxu0 0.0
    %1690 = vmatpush1.msra.mxu0 0.0
    %1691 = vmatprep.subr.mxu0 0.0
    %1692 = vmatpush1.msra.mxu0 0.0
    %1693 = vmatprep.subr.mxu0 0.0
    %1694 = vmatpush1.msra.mxu0 0.0
    %1695 = vmatprep.subr.mxu0 0.0
    %1696 = vmatpush1.msra.mxu0 0.0
    %1697 = vmatprep.subr.mxu0 0.0
    %1698 = vmatpush1.msra.mxu0 0.0
    %1699 = vmatprep.subr.mxu0 0.0
    %1700 = vmatpush1.msra.mxu0 0.0
    %1701 = vmatprep.mubr.f32.mxu0 0.0
    %1702 = vmatmul.mubr.f32.gmra.mrb[0].mxu0 %v1565
    %v1703 = vpop.f32.mrb[0].mxu0
    %v1704 = vadd.f32 %v95, %v1703
    %v1705 = vpop.f32.mrb[0].mxu0
    %1706 = vdwg.mxu0
    %v1707 = vmax.f32 %v1704, 0.0
    %v1708 = vmul.f32 %v1707, %v99
    %v1709 = vsel %vm568, %v1708, 0.0
    %1710 = vadd.xlane.f32.xlu0 %v1709
    %v1711 = vpop.xlane.xlu0 %1710
    %v1712 = vadd.f32 %v1711, %v103
    %v1713 = vxor.u32 %v1712, 2147483648
    %v1714 = vmul.f32 %v1713, 1.442695
    %v1715 = vpow.pop %v1714
    %v1716 = vadd.f32 %v1715, 1.0
    %v1717 = vrcp.pop %v1716
    %v1718 = vmul.f32 1.0, %v1717
    %1720 = vrot.lane.b32.xlu0 %v1634, 32
    %v1721 = vpop.permute.xlu0 %1720
    %v1723 = vsel %vm198, %v1721, 0.0
    %1724 = vadd.xlane.f32.xlu0 %v1723
    %v1725 = vpop.xlane.xlu0 %1724
    %v1726 = vmul.f32 %v1725, %v202
    %v1727 = vmul.f32 %v1634, %v1634
    %1729 = vrot.lane.b32.xlu0 %v1727, 32
    %v1730 = vpop.permute.xlu0 %1729
    %v1732 = vsel %vm198, %v1730, 0.0
    %1733 = vadd.xlane.f32.xlu0 %v1732
    %v1734 = vpop.xlane.xlu0 %1733
    %v1735 = vmul.f32 %v1734, %v202
    %v1736 = vmul.f32 %v1726, %v1726
    %v1737 = vsub.f32 %v1735, %v1736
    %v1738 = vsub.f32 %v1634, %v1726
    %v1739 = vadd.f32 %v1737, 1e-05
    %v1740 = vrsqrt.pop %v1739
    %v1741 = vmul.f32 %v1738, %v1740
    %v1742 = vmul.f32 %v1741, %v604
    %v1743 = vadd.f32 %v1742, %v609
    %v1744 = vmax.f32 %v1743, 0.0
    %1746 = vrot.lane.b32.xlu0 %v1744, 32
    %v1747 = vpop.permute.xlu0 %1746
    %v1748 = vsel %vm124, %v1747, 0
    %1750 = vmatprep.subr.mxu0 0.0
    %1751 = vmatpush1.msra.mxu0 %v64
    %1752 = vmatprep.subr.mxu0 0.0
    %1753 = vmatpush1.msra.mxu0 %v67
    %1754 = vmatprep.subr.mxu0 0.0
    %1755 = vmatpush1.msra.mxu0 %v70
    %1756 = vmatprep.subr.mxu0 0.0
    %1757 = vmatpush1.msra.mxu0 %v73
    %1758 = vmatprep.subr.mxu0 0.0
    %1759 = vmatpush1.msra.mxu0 0.0
    %1760 = vmatprep.subr.mxu0 0.0
    %1761 = vmatpush1.msra.mxu0 0.0
    %1762 = vmatprep.subr.mxu0 0.0
    %1763 = vmatpush1.msra.mxu0 0.0
    %1764 = vmatprep.subr.mxu0 0.0
    %1765 = vmatpush1.msra.mxu0 0.0
    %1766 = vmatprep.subr.mxu0 0.0
    %1767 = vmatpush1.msra.mxu0 0.0
    %1768 = vmatprep.subr.mxu0 0.0
    %1769 = vmatpush1.msra.mxu0 0.0
    %1770 = vmatprep.subr.mxu0 0.0
    %1771 = vmatpush1.msra.mxu0 0.0
    %1772 = vmatprep.subr.mxu0 0.0
    %1773 = vmatpush1.msra.mxu0 0.0
    %1774 = vmatprep.subr.mxu0 0.0
    %1775 = vmatpush1.msra.mxu0 0.0
    %1776 = vmatprep.subr.mxu0 0.0
    %1777 = vmatpush1.msra.mxu0 0.0
    %1778 = vmatprep.subr.mxu0 0.0
    %1779 = vmatpush1.msra.mxu0 0.0
    %1780 = vmatprep.subr.mxu0 0.0
    %1781 = vmatpush1.msra.mxu0 0.0
    %1782 = vmatprep.subr.mxu0 0.0
    %1783 = vmatpush1.msra.mxu0 0.0
    %1784 = vmatprep.subr.mxu0 0.0
    %1785 = vmatpush1.msra.mxu0 0.0
    %1786 = vmatprep.subr.mxu0 0.0
    %1787 = vmatpush1.msra.mxu0 0.0
    %1788 = vmatprep.subr.mxu0 0.0
    %1789 = vmatpush1.msra.mxu0 0.0
    %1790 = vmatprep.subr.mxu0 0.0
    %1791 = vmatpush1.msra.mxu0 0.0
    %1792 = vmatprep.subr.mxu0 0.0
    %1793 = vmatpush1.msra.mxu0 0.0
    %1794 = vmatprep.subr.mxu0 0.0
    %1795 = vmatpush1.msra.mxu0 0.0
    %1796 = vmatprep.subr.mxu0 0.0
    %1797 = vmatpush1.msra.mxu0 0.0
    %1798 = vmatprep.subr.mxu0 0.0
    %1799 = vmatpush1.msra.mxu0 0.0
    %1800 = vmatprep.subr.mxu0 0.0
    %1801 = vmatpush1.msra.mxu0 0.0
    %1802 = vmatprep.subr.mxu0 0.0
    %1803 = vmatpush1.msra.mxu0 0.0
    %1804 = vmatprep.subr.mxu0 0.0
    %1805 = vmatpush1.msra.mxu0 0.0
    %1806 = vmatprep.subr.mxu0 0.0
    %1807 = vmatpush1.msra.mxu0 0.0
    %1808 = vmatprep.subr.mxu0 0.0
    %1809 = vmatpush1.msra.mxu0 0.0
    %1810 = vmatprep.subr.mxu0 0.0
    %1811 = vmatpush1.msra.mxu0 0.0
    %1812 = vmatprep.subr.mxu0 0.0
    %1813 = vmatpush1.msra.mxu0 0.0
    %1814 = vmatprep.mubr.f32.mxu0 0.0
    %1815 = vmatmul.mubr.f32.gmra.mrb[0].mxu0 %v1748
    %v1816 = vpop.f32.mrb[0].mxu0
    %v1817 = vadd.f32 %v91, %v1816
    %v1818 = vpop.f32.mrb[0].mxu0
    %1819 = vdwg.mxu0
    %1821 = vrot.lane.b32.xlu0 %v968, 32
    %v1822 = vpop.permute.xlu0 %1821
    %1825 = vrot.lane.b32.xlu0 %v1251, 64
    %v1826 = vpop.permute.xlu0 %1825
    %1829 = vrot.lane.b32.xlu0 %v1534, 96
    %v1830 = vpop.permute.xlu0 %1829
    %v1832 = vsel %vm124, %v685, %v1822
    %vm1833 = vcmask 523264
    %v1834 = vsel %vm1833, %v1832, %v1826
    %vm1835 = vcmask 785408
    %v1836 = vsel %vm1835, %v1834, %v1830
    %v1839 = vcombine.low %v1836, %v1817
    %v1841 = vunpack.c.l.s4 1983009808
    %v1842 = vunpack.c.0.s8 %v1841
    %v1843 = vlaneseq
    %v1844 = vshrl.u32 %v1843, 7
    %v1845 = vsub.s32 %v1842, %v1844
    %v1846 = vrot.slane %v1839, %v1845
    %vm1848 = vcmask 1041408
    %vm1849 = vcmask 257026
    %vm1850 = vmor %vm1849, %vm1848
    %1851 = vst.msk [vmem:[%s4] sm:$0xf] %vm1850, %v1846
    %1853 = vrot.lane.b32.xlu0 %v995, 32
    %v1854 = vpop.permute.xlu0 %1853
    %1856 = vrot.lane.b32.xlu0 %v1278, 64
    %v1857 = vpop.permute.xlu0 %1856
    %v1859 = vsel %vm124, %v407, %v712
    %v1860 = vsel %vm1833, %v1859, %v1854
    %v1861 = vsel %vm1835, %v1860, %v1857
    %v1863 = vcombine.low %v1861, %v1564
    %v1865 = vunpack.c.l.s4 1983009808
    %v1866 = vunpack.c.0.s8 %v1865
    %v1867 = vlaneseq
    %v1868 = vshrl.u32 %v1867, 7
    %v1869 = vsub.s32 %v1866, %v1868
    %v1870 = vrot.slane %v1863, %v1869
    %1872 = vst.msk [vmem:[%s5] sm:$0xf] %vm1850, %v1870
    %1874 = vrot.lane.b32.xlu0 %v869, 1
    %v1875 = vpop.permute.xlu0 %1874
    %1878 = vrot.lane.b32.xlu0 %v1152, 2
    %v1879 = vpop.permute.xlu0 %1878
    %1882 = vrot.lane.b32.xlu0 %v1435, 3
    %v1883 = vpop.permute.xlu0 %1882
    %1886 = vrot.lane.b32.xlu0 %v1718, 4
    %v1887 = vpop.permute.xlu0 %1886
    %vm1889 = vcmask 7168
    %v1890 = vsel %vm1889, %v578, %v1875
    %vm1891 = vcmask 15360
    %v1892 = vsel %vm1891, %v1890, %v1879
    %vm1893 = vcmask 23552
    %v1894 = vsel %vm1893, %v1892, %v1883
    %vm1895 = vcmask 31744
    %v1896 = vsel %vm1895, %v1894, %v1887
    %vm1897 = vcmask 33792
    %1898 = vst.msk [vmem:[#allocation8] sm:$0x3] %vm1897, %v1896
    // Predicated region
    $region30: #{subgoal_decomposer.1} parent=1 // pred_check
      _
    $region31: #{subgoal_decomposer.1} parent=1 // pred_check_branch
      %1900 = sbr.rel (0) target = $region33
    $region32: #{subgoal_decomposer.1} parent=1 // pred_region
      _
    $region33: #{subgoal_decomposer.1} parent=1 // pred_fallthru
      _
    // Predicated region
    $region34: #{subgoal_decomposer.1} parent=1 // pred_check
      _
    $region35: #{subgoal_decomposer.1} parent=1 // pred_check_branch
      %1902 = sbr.rel (0) target = $region37
    $region36: #{subgoal_decomposer.1} parent=1 // pred_region
      _
    $region37: #{subgoal_decomposer.1} parent=1 // pred_fallthru
      _
    // Predicated region
    $region38: #{subgoal_decomposer.1} parent=1 // pred_check
      _
    $region39: #{subgoal_decomposer.1} parent=1 // pred_check_branch
      %1904 = sbr.rel (0) target = $region41
    $region40: #{subgoal_decomposer.1} parent=1 // pred_region
      %s1906 = ssub.s32 32, 32
      %1907 = vsyncadd [#allocation4], %s1906
      %s1909 = sshll.u32 [#allocation8], 4
      %s1910 = int_to_ptr.vmem [resolvable:$true] %s1909
      %1912 = dma.vmem_to_hbm [thread:$0]  %s1910, 32, %s6, [#allocation4]
    $region41: #{subgoal_decomposer.1} parent=1 // pred_fallthru
      _
    // Predicated region
    $region42: #{subgoal_decomposer.1} parent=1 // pred_check
      _
    $region43: #{subgoal_decomposer.1} parent=1 // pred_check_branch
      %1914 = sbr.rel (0) target = $region45
    $region44: #{subgoal_decomposer.1} parent=1 // pred_region
      _
    $region45: #{subgoal_decomposer.1} parent=1 // pred_fallthru
      _
    // Predicated region
    $region46: #{subgoal_decomposer.1} parent=1 // pred_check
      _
    $region47: #{subgoal_decomposer.1} parent=1 // pred_check_branch
      %1916 = sbr.rel (0) target = $region49
    $region48: #{subgoal_decomposer.1} parent=1 // pred_region
      _
    $region49: #{subgoal_decomposer.1} parent=1 // pred_fallthru
      _
    // Predicated region
    $region50: #{subgoal_decomposer.1} parent=1 // pred_check
      _
    $region51: #{subgoal_decomposer.1} parent=1 // pred_check_branch
      %1918 = sbr.rel (0) target = $region53
    $region52: #{subgoal_decomposer.1} parent=1 // pred_region
      %1919 = dma.done [#allocation4], 32
    $region53: #{subgoal_decomposer.1} parent=1 // pred_fallthru
      _
    %1920 = vsyncpa [#allocation3], 1
    %1921 = vsyncpa [#allocation6], 1
    %1922 = vsyncpa [#allocation4], 1

</llo_original>
